<compile_context>
chip_gen: v7x
topology: tpu7x:2x2x1
jax: 0.10.0
libtpu: 0.0.40
codegen_flags: <defaults>
</compile_context>

<pallas_src>
import functools
import math

import jax
import jax.numpy as jnp
from jax import lax
from jax.experimental import pallas as pl
from jax.experimental.pallas import tpu as pltpu  # noqa: F401  (TPU backend assumed)

N_HEAD = 4
N_EMBD = 32
D_HEAD = N_EMBD // N_HEAD
SEQ = 8
BATCH = 2
EPS = 1e-5

# Row layout of the packed small-parameter slab, shape (8, 4*D):
#   0: ln1_g  1: ln1_b  2: b_out  3: ln2_g  4: ln2_b  5: b2  6: b_in  7: b1
_PACK_ORDER = ("ln1_g", "ln1_b", "b_out", "ln2_g", "ln2_b", "b2", "b_in", "b1")


def clip_layer_kernel(x_ref, w_in_ref, w_out_ref, w1_ref, w2_ref, vec_ref,
                      o_ref, *, batch, seq, n_head):
    x = x_ref[...]                                  # (B*S, D) fp32
    _, D = x.shape
    d_head = D // n_head

    def row(r, width):                              # (1, width) slice of packed slab
        return vec_ref[r:r + 1, 0:width]

    ln1_g, ln1_b = row(0, D), row(1, D)
    b_out_v, ln2_g = row(2, D), row(3, D)
    ln2_b, b2_v = row(4, D), row(5, D)
    b_in_v = row(6, 3 * D)
    b1_v = row(7, 4 * D)

    def layer_norm(v, g, b):
        mu = jnp.mean(v, axis=-1, keepdims=True)
        var = jnp.mean((v - mu) ** 2, axis=-1, keepdims=True)
        return (v - mu) * lax.rsqrt(var + EPS) * g + b

    def mm(a, w):                                   # 2-D matmul on the MXU
        return jnp.dot(a, w, preferred_element_type=jnp.float32)

    # ---- block 1: LN -> causal multi-head self-attention -> residual ----
    residue = x
    h = layer_norm(x, ln1_g, ln1_b)
    qkv = mm(h, w_in_ref[...]) + b_in_v             # (B*S, 3D)

    # strict upper-triangular (triu(1)) additive mask; finite large negative so
    # exp() underflows to exactly 0 with no inf-inf/NaN risk.
    rows_i = lax.broadcasted_iota(jnp.int32, (seq, seq), 0)
    cols_i = lax.broadcasted_iota(jnp.int32, (seq, seq), 1)
    neg_mask = jnp.where(cols_i > rows_i, -1e30, 0.0).astype(jnp.float32)

    inv_sqrt_dh = 1.0 / math.sqrt(d_head)
    w_out = w_out_ref[...]                          # (D, D)

    x2_blocks = []
    for b in range(batch):                          # tiny, unrolled at trace time
        r0 = b * seq
        qkv_b = qkv[r0:r0 + seq, :]                 # (S, 3D)
        attn_b = None
        for hd in range(n_head):
            lo, hi = hd * d_head, (hd + 1) * d_head
            qh = qkv_b[:, lo:hi] * inv_sqrt_dh      # scale folded into q
            kh = qkv_b[:, D + lo:D + hi]
            vh = qkv_b[:, 2 * D + lo:2 * D + hi]
            # q @ k^T without an explicit transpose: contract last dims.
            s = lax.dot_general(qh, kh, (((1,), (1,)), ((), ())),
                                preferred_element_type=jnp.float32)   # (S, S)
            s = s + neg_mask
            m = jnp.max(s, axis=-1, keepdims=True)
            p = jnp.exp(s - m)
            p = p / jnp.sum(p, axis=-1, keepdims=True)
            ho = mm(p, vh)                          # (S, d_head)
            # concat of heads folded into the output projection:
            contrib = mm(ho, w_out[lo:hi, :])       # (S, D)
            attn_b = contrib if attn_b is None else attn_b + contrib
        x2_blocks.append(attn_b + b_out_v + residue[r0:r0 + seq, :])
    x2 = x2_blocks[0] if batch == 1 else jnp.concatenate(x2_blocks, axis=0)

    # ---- block 2: LN -> Linear -> QuickGELU -> Linear -> residual ----
    h2 = layer_norm(x2, ln2_g, ln2_b)
    h2 = mm(h2, w1_ref[...]) + b1_v                 # (B*S, 4D)
    h2 = h2 * jax.nn.sigmoid(1.702 * h2)            # QuickGELU
    h2 = mm(h2, w2_ref[...]) + b2_v                 # (B*S, D)
    o_ref[...] = x2 + h2


def pack_small_params(p, n_embd):
    """Pack the 8 small LN/bias vectors into one (8, 4*n_embd) fp32 slab."""
    width = 4 * n_embd

    def pad(v):
        v = jnp.asarray(v, jnp.float32).reshape(-1)
        return jnp.pad(v, (0, width - v.shape[0]))

    return jnp.stack([pad(p[k]) for k in _PACK_ORDER], axis=0)   # (8, 4*D)


def clip_layer_pallas(x, params):
    B, S, D = x.shape
    x2d = x.reshape(B * S, D)                       # lane layout unchanged, one block
    packed = pack_small_params(params, D)
    kernel = functools.partial(clip_layer_kernel, batch=B, seq=S, n_head=N_HEAD)
    # Single program, no grid: every operand is a full-array VMEM block
    # (total footprint ~60 KB), so no per-step pipeline overhead.
    out2d = pl.pallas_call(
        kernel,
        out_shape=jax.ShapeDtypeStruct((B * S, D), jnp.float32),
    )(x2d, params["w_in"], params["w_out"], params["w1"], params["w2"], packed)
    return out2d.reshape(B, S, D)


def init_params(key, n_embd):
    ks = jax.random.split(key, 12)
    s = 0.02
    return {
        "ln1_g": 1.0 + s * jax.random.normal(ks[0], (n_embd,), jnp.float32),
        "ln1_b": s * jax.random.normal(ks[1], (n_embd,), jnp.float32),
        "w_in":  s * jax.random.normal(ks[2], (n_embd, 3 * n_embd), jnp.float32),
        "b_in":  s * jax.random.normal(ks[3], (3 * n_embd,), jnp.float32),
        "w_out": s * jax.random.normal(ks[4], (n_embd, n_embd), jnp.float32),
        "b_out": s * jax.random.normal(ks[5], (n_embd,), jnp.float32),
        "ln2_g": 1.0 + s * jax.random.normal(ks[6], (n_embd,), jnp.float32),
        "ln2_b": s * jax.random.normal(ks[7], (n_embd,), jnp.float32),
        "w1":    s * jax.random.normal(ks[8], (n_embd, 4 * n_embd), jnp.float32),
        "b1":    s * jax.random.normal(ks[9], (4 * n_embd,), jnp.float32),
        "w2":    s * jax.random.normal(ks[10], (4 * n_embd, n_embd), jnp.float32),
        "b2":    s * jax.random.normal(ks[11], (n_embd,), jnp.float32),
    }


def clip_layer_ref(x, p):
    """Pure-JAX reference mirroring the PyTorch forward exactly."""
    def ln(v, g, b):
        mu = v.mean(-1, keepdims=True)
        var = ((v - mu) ** 2).mean(-1, keepdims=True)
        return (v - mu) / jnp.sqrt(var + EPS) * g + b

    B, S, D = x.shape
    res = x
    h = ln(x, p["ln1_g"], p["ln1_b"])
    qkv = h @ p["w_in"] + p["b_in"]
    q, k, v = jnp.split(qkv, 3, axis=-1)
    q = q.reshape(B, S, N_HEAD, D_HEAD).transpose(0, 2, 1, 3)
    k = k.reshape(B, S, N_HEAD, D_HEAD).transpose(0, 2, 1, 3)
    v = v.reshape(B, S, N_HEAD, D_HEAD).transpose(0, 2, 1, 3)
    w = q @ jnp.swapaxes(k, -1, -2)
    mask = jnp.triu(jnp.ones((S, S), bool), 1)
    w = jnp.where(mask, -jnp.inf, w)
    w = w / math.sqrt(D_HEAD)
    w = jax.nn.softmax(w, axis=-1)
    o = (w @ v).transpose(0, 2, 1, 3).reshape(B, S, D)
    o = o @ p["w_out"] + p["b_out"]
    x = o + res
    res = x
    h = ln(x, p["ln2_g"], p["ln2_b"])
    h = h @ p["w1"] + p["b1"]
    h = h * jax.nn.sigmoid(1.702 * h)
    h = h @ p["w2"] + p["b2"]
    return h + res


if __name__ == "__main__":
    key = jax.random.PRNGKey(0)
    kx, kp = jax.random.split(key)
    x = jax.random.normal(kx, (BATCH, SEQ, N_EMBD), jnp.float32)
    params = init_params(kp, N_EMBD)

    out = jax.block_until_ready(clip_layer_pallas(x, params))
    ref = clip_layer_ref(x, params)

    assert out.shape == (BATCH, SEQ, N_EMBD)
    err = jnp.max(jnp.abs(out - ref))
    assert jnp.allclose(out, ref, atol=1e-4, rtol=1e-4), f"max abs err = {err}"
    print("KERNEL_OK")
</pallas_src>

<mosaic_0001>
module attributes {stable_mosaic.version = 11 : i64} {
  func.func @clip_layer_kernel(%arg0: memref<16x32xf32, #tpu.memory_space<vmem>>, %arg1: memref<32x96xf32, #tpu.memory_space<vmem>>, %arg2: memref<32x32xf32, #tpu.memory_space<vmem>>, %arg3: memref<32x128xf32, #tpu.memory_space<vmem>>, %arg4: memref<128x32xf32, #tpu.memory_space<vmem>>, %arg5: memref<8x128xf32, #tpu.memory_space<vmem>>, %arg6: memref<16x32xf32, #tpu.memory_space<vmem>>) attributes {dimension_semantics = [], scalar_prefetch = 0 : i64, scratch_operands = 0 : i64, tpu.core_type = #tpu.core_type<tc>} {
    %c0 = arith.constant 0 : index
    %c0_0 = arith.constant 0 : index
    %0 = vector.load %arg0[%c0, %c0_0] : memref<16x32xf32, #tpu.memory_space<vmem>>, vector<16x32xf32>
    %c0_1 = arith.constant 0 : index
    %c0_2 = arith.constant 0 : index
    %1 = vector.load %arg5[%c0_1, %c0_2] : memref<8x128xf32, #tpu.memory_space<vmem>>, vector<1x32xf32>
    %c1 = arith.constant 1 : index
    %c0_3 = arith.constant 0 : index
    %2 = vector.load %arg5[%c1, %c0_3] : memref<8x128xf32, #tpu.memory_space<vmem>>, vector<1x32xf32>
    %c2 = arith.constant 2 : index
    %c0_4 = arith.constant 0 : index
    %3 = vector.load %arg5[%c2, %c0_4] : memref<8x128xf32, #tpu.memory_space<vmem>>, vector<1x32xf32>
    %c3 = arith.constant 3 : index
    %c0_5 = arith.constant 0 : index
    %4 = vector.load %arg5[%c3, %c0_5] : memref<8x128xf32, #tpu.memory_space<vmem>>, vector<1x32xf32>
    %c4 = arith.constant 4 : index
    %c0_6 = arith.constant 0 : index
    %5 = vector.load %arg5[%c4, %c0_6] : memref<8x128xf32, #tpu.memory_space<vmem>>, vector<1x32xf32>
    %c5 = arith.constant 5 : index
    %c0_7 = arith.constant 0 : index
    %6 = vector.load %arg5[%c5, %c0_7] : memref<8x128xf32, #tpu.memory_space<vmem>>, vector<1x32xf32>
    %c6 = arith.constant 6 : index
    %c0_8 = arith.constant 0 : index
    %7 = vector.load %arg5[%c6, %c0_8] : memref<8x128xf32, #tpu.memory_space<vmem>>, vector<1x96xf32>
    %c7 = arith.constant 7 : index
    %c0_9 = arith.constant 0 : index
    %8 = vector.load %arg5[%c7, %c0_9] : memref<8x128xf32, #tpu.memory_space<vmem>>, vector<1x128xf32>
    %cst = arith.constant dense<0.000000e+00> : vector<16xf32>
    %9 = vector.multi_reduction <add>, %0, %cst [1] : vector<16x32xf32> to vector<16xf32>
    %10 = vector.shape_cast %9 : vector<16xf32> to vector<16x1xf32>
    %cst_10 = arith.constant 3.200000e+01 : f32
    %11 = vector.broadcast %cst_10 : f32 to vector<16x1xf32>
    %12 = arith.divf %10, %11 : vector<16x1xf32>
    %13 = vector.broadcast %12 : vector<16x1xf32> to vector<16x32xf32>
    %14 = arith.subf %0, %13 : vector<16x32xf32>
    %15 = arith.mulf %14, %14 : vector<16x32xf32>
    %cst_11 = arith.constant dense<0.000000e+00> : vector<16xf32>
    %16 = vector.multi_reduction <add>, %15, %cst_11 [1] : vector<16x32xf32> to vector<16xf32>
    %17 = vector.shape_cast %16 : vector<16xf32> to vector<16x1xf32>
    %cst_12 = arith.constant 3.200000e+01 : f32
    %18 = vector.broadcast %cst_12 : f32 to vector<16x1xf32>
    %19 = arith.divf %17, %18 : vector<16x1xf32>
    %20 = vector.broadcast %12 : vector<16x1xf32> to vector<16x32xf32>
    %21 = arith.subf %0, %20 : vector<16x32xf32>
    %cst_13 = arith.constant 9.99999974E-6 : f32
    %22 = vector.broadcast %cst_13 : f32 to vector<16x1xf32>
    %23 = arith.addf %19, %22 : vector<16x1xf32>
    %24 = math.rsqrt %23 : vector<16x1xf32>
    %25 = vector.broadcast %24 : vector<16x1xf32> to vector<16x32xf32>
    %26 = arith.mulf %21, %25 : vector<16x32xf32>
    %27 = vector.broadcast %1 : vector<1x32xf32> to vector<16x32xf32>
    %28 = arith.mulf %26, %27 : vector<16x32xf32>
    %29 = vector.broadcast %2 : vector<1x32xf32> to vector<16x32xf32>
    %30 = arith.addf %28, %29 : vector<16x32xf32>
    %c0_14 = arith.constant 0 : index
    %c0_15 = arith.constant 0 : index
    %31 = vector.load %arg1[%c0_14, %c0_15] : memref<32x96xf32, #tpu.memory_space<vmem>>, vector<32x96xf32>
    %cst_16 = arith.constant dense<0.000000e+00> : vector<16x96xf32>
    %32 = tpu.matmul %30, %31, %cst_16 {dimension_numbers = #tpu.dot_dimension_numbers<[1], [0], [0], [1], [0, 0, 1, 1], [], []>} : vector<16x32xf32>, vector<32x96xf32>, vector<16x96xf32> -> vector<16x96xf32>
    %33 = vector.broadcast %7 : vector<1x96xf32> to vector<16x96xf32>
    %34 = arith.addf %32, %33 : vector<16x96xf32>
    %35 = tpu.iota {dimensions = array<i32: 0>} : vector<8x8xi32>
    %36 = tpu.iota {dimensions = array<i32: 1>} : vector<8x8xi32>
    %37 = arith.cmpi sgt, %36, %35 : vector<8x8xi32>
    %cst_17 = arith.constant -1.000000e+30 : f32
    %cst_18 = arith.constant 0.000000e+00 : f32
    %38 = vector.broadcast %cst_17 : f32 to vector<8x8xf32>
    %39 = vector.broadcast %cst_18 : f32 to vector<8x8xf32>
    %40 = arith.select %37, %38, %39 : vector<8x8xi1>, vector<8x8xf32>
    %c0_19 = arith.constant 0 : index
    %c0_20 = arith.constant 0 : index
    %41 = vector.load %arg2[%c0_19, %c0_20] : memref<32x32xf32, #tpu.memory_space<vmem>>, vector<32x32xf32>
    %42 = vector.extract_strided_slice %34 {offsets = [0, 0], sizes = [8, 96], strides = [1, 1]} : vector<16x96xf32> to vector<8x96xf32>
    %43 = vector.extract_strided_slice %42 {offsets = [0, 0], sizes = [8, 8], strides = [1, 1]} : vector<8x96xf32> to vector<8x8xf32>
    %cst_21 = arith.constant 0.353553385 : f32
    %44 = vector.broadcast %cst_21 : f32 to vector<8x8xf32>
    %45 = arith.mulf %43, %44 : vector<8x8xf32>
    %46 = vector.extract_strided_slice %42 {offsets = [0, 32], sizes = [8, 8], strides = [1, 1]} : vector<8x96xf32> to vector<8x8xf32>
    %47 = vector.extract_strided_slice %42 {offsets = [0, 64], sizes = [8, 8], strides = [1, 1]} : vector<8x96xf32> to vector<8x8xf32>
    %cst_22 = arith.constant dense<0.000000e+00> : vector<8x8xf32>
    %48 = tpu.matmul %45, %46, %cst_22 {dimension_numbers = #tpu.dot_dimension_numbers<[1], [1], [0], [0], [0, 0, 1, 0], [], []>} : vector<8x8xf32>, vector<8x8xf32>, vector<8x8xf32> -> vector<8x8xf32>
    %49 = arith.addf %48, %40 : vector<8x8xf32>
    %cst_23 = arith.constant dense<0xFF800000> : vector<8xf32>
    %50 = vector.multi_reduction <maximumf>, %49, %cst_23 [1] : vector<8x8xf32> to vector<8xf32>
    %51 = vector.shape_cast %50 : vector<8xf32> to vector<8x1xf32>
    %52 = vector.broadcast %51 : vector<8x1xf32> to vector<8x8xf32>
    %53 = arith.subf %49, %52 : vector<8x8xf32>
    %54 = math.exp %53 : vector<8x8xf32>
    %cst_24 = arith.constant dense<0.000000e+00> : vector<8xf32>
    %55 = vector.multi_reduction <add>, %54, %cst_24 [1] : vector<8x8xf32> to vector<8xf32>
    %56 = vector.shape_cast %55 : vector<8xf32> to vector<8x1xf32>
    %57 = vector.broadcast %56 : vector<8x1xf32> to vector<8x8xf32>
    %58 = arith.divf %54, %57 : vector<8x8xf32>
    %cst_25 = arith.constant dense<0.000000e+00> : vector<8x8xf32>
    %59 = tpu.matmul %58, %47, %cst_25 {dimension_numbers = #tpu.dot_dimension_numbers<[1], [0], [0], [1], [0, 0, 1, 1], [], []>} : vector<8x8xf32>, vector<8x8xf32>, vector<8x8xf32> -> vector<8x8xf32>
    %60 = vector.extract_strided_slice %41 {offsets = [0, 0], sizes = [8, 32], strides = [1, 1]} : vector<32x32xf32> to vector<8x32xf32>
    %cst_26 = arith.constant dense<0.000000e+00> : vector<8x32xf32>
    %61 = tpu.matmul %59, %60, %cst_26 {dimension_numbers = #tpu.dot_dimension_numbers<[1], [0], [0], [1], [0, 0, 1, 1], [], []>} : vector<8x8xf32>, vector<8x32xf32>, vector<8x32xf32> -> vector<8x32xf32>
    %62 = vector.extract_strided_slice %42 {offsets = [0, 8], sizes = [8, 8], strides = [1, 1]} : vector<8x96xf32> to vector<8x8xf32>
    %cst_27 = arith.constant 0.353553385 : f32
    %63 = vector.broadcast %cst_27 : f32 to vector<8x8xf32>
    %64 = arith.mulf %62, %63 : vector<8x8xf32>
    %65 = vector.extract_strided_slice %42 {offsets = [0, 40], sizes = [8, 8], strides = [1, 1]} : vector<8x96xf32> to vector<8x8xf32>
    %66 = vector.extract_strided_slice %42 {offsets = [0, 72], sizes = [8, 8], strides = [1, 1]} : vector<8x96xf32> to vector<8x8xf32>
    %cst_28 = arith.constant dense<0.000000e+00> : vector<8x8xf32>
    %67 = tpu.matmul %64, %65, %cst_28 {dimension_numbers = #tpu.dot_dimension_numbers<[1], [1], [0], [0], [0, 0, 1, 0], [], []>} : vector<8x8xf32>, vector<8x8xf32>, vector<8x8xf32> -> vector<8x8xf32>
    %68 = arith.addf %67, %40 : vector<8x8xf32>
    %cst_29 = arith.constant dense<0xFF800000> : vector<8xf32>
    %69 = vector.multi_reduction <maximumf>, %68, %cst_29 [1] : vector<8x8xf32> to vector<8xf32>
    %70 = vector.shape_cast %69 : vector<8xf32> to vector<8x1xf32>
    %71 = vector.broadcast %70 : vector<8x1xf32> to vector<8x8xf32>
    %72 = arith.subf %68, %71 : vector<8x8xf32>
    %73 = math.exp %72 : vector<8x8xf32>
    %cst_30 = arith.constant dense<0.000000e+00> : vector<8xf32>
    %74 = vector.multi_reduction <add>, %73, %cst_30 [1] : vector<8x8xf32> to vector<8xf32>
    %75 = vector.shape_cast %74 : vector<8xf32> to vector<8x1xf32>
    %76 = vector.broadcast %75 : vector<8x1xf32> to vector<8x8xf32>
    %77 = arith.divf %73, %76 : vector<8x8xf32>
    %cst_31 = arith.constant dense<0.000000e+00> : vector<8x8xf32>
    %78 = tpu.matmul %77, %66, %cst_31 {dimension_numbers = #tpu.dot_dimension_numbers<[1], [0], [0], [1], [0, 0, 1, 1], [], []>} : vector<8x8xf32>, vector<8x8xf32>, vector<8x8xf32> -> vector<8x8xf32>
    %79 = vector.extract_strided_slice %41 {offsets = [8, 0], sizes = [8, 32], strides = [1, 1]} : vector<32x32xf32> to vector<8x32xf32>
    %cst_32 = arith.constant dense<0.000000e+00> : vector<8x32xf32>
    %80 = tpu.matmul %78, %79, %cst_32 {dimension_numbers = #tpu.dot_dimension_numbers<[1], [0], [0], [1], [0, 0, 1, 1], [], []>} : vector<8x8xf32>, vector<8x32xf32>, vector<8x32xf32> -> vector<8x32xf32>
    %81 = arith.addf %61, %80 : vector<8x32xf32>
    %82 = vector.extract_strided_slice %42 {offsets = [0, 16], sizes = [8, 8], strides = [1, 1]} : vector<8x96xf32> to vector<8x8xf32>
    %cst_33 = arith.constant 0.353553385 : f32
    %83 = vector.broadcast %cst_33 : f32 to vector<8x8xf32>
    %84 = arith.mulf %82, %83 : vector<8x8xf32>
    %85 = vector.extract_strided_slice %42 {offsets = [0, 48], sizes = [8, 8], strides = [1, 1]} : vector<8x96xf32> to vector<8x8xf32>
    %86 = vector.extract_strided_slice %42 {offsets = [0, 80], sizes = [8, 8], strides = [1, 1]} : vector<8x96xf32> to vector<8x8xf32>
    %cst_34 = arith.constant dense<0.000000e+00> : vector<8x8xf32>
    %87 = tpu.matmul %84, %85, %cst_34 {dimension_numbers = #tpu.dot_dimension_numbers<[1], [1], [0], [0], [0, 0, 1, 0], [], []>} : vector<8x8xf32>, vector<8x8xf32>, vector<8x8xf32> -> vector<8x8xf32>
    %88 = arith.addf %87, %40 : vector<8x8xf32>
    %cst_35 = arith.constant dense<0xFF800000> : vector<8xf32>
    %89 = vector.multi_reduction <maximumf>, %88, %cst_35 [1] : vector<8x8xf32> to vector<8xf32>
    %90 = vector.shape_cast %89 : vector<8xf32> to vector<8x1xf32>
    %91 = vector.broadcast %90 : vector<8x1xf32> to vector<8x8xf32>
    %92 = arith.subf %88, %91 : vector<8x8xf32>
    %93 = math.exp %92 : vector<8x8xf32>
    %cst_36 = arith.constant dense<0.000000e+00> : vector<8xf32>
    %94 = vector.multi_reduction <add>, %93, %cst_36 [1] : vector<8x8xf32> to vector<8xf32>
    %95 = vector.shape_cast %94 : vector<8xf32> to vector<8x1xf32>
    %96 = vector.broadcast %95 : vector<8x1xf32> to vector<8x8xf32>
    %97 = arith.divf %93, %96 : vector<8x8xf32>
    %cst_37 = arith.constant dense<0.000000e+00> : vector<8x8xf32>
    %98 = tpu.matmul %97, %86, %cst_37 {dimension_numbers = #tpu.dot_dimension_numbers<[1], [0], [0], [1], [0, 0, 1, 1], [], []>} : vector<8x8xf32>, vector<8x8xf32>, vector<8x8xf32> -> vector<8x8xf32>
    %99 = vector.extract_strided_slice %41 {offsets = [16, 0], sizes = [8, 32], strides = [1, 1]} : vector<32x32xf32> to vector<8x32xf32>
    %cst_38 = arith.constant dense<0.000000e+00> : vector<8x32xf32>
    %100 = tpu.matmul %98, %99, %cst_38 {dimension_numbers = #tpu.dot_dimension_numbers<[1], [0], [0], [1], [0, 0, 1, 1], [], []>} : vector<8x8xf32>, vector<8x32xf32>, vector<8x32xf32> -> vector<8x32xf32>
    %101 = arith.addf %81, %100 : vector<8x32xf32>
    %102 = vector.extract_strided_slice %42 {offsets = [0, 24], sizes = [8, 8], strides = [1, 1]} : vector<8x96xf32> to vector<8x8xf32>
    %cst_39 = arith.constant 0.353553385 : f32
    %103 = vector.broadcast %cst_39 : f32 to vector<8x8xf32>
    %104 = arith.mulf %102, %103 : vector<8x8xf32>
    %105 = vector.extract_strided_slice %42 {offsets = [0, 56], sizes = [8, 8], strides = [1, 1]} : vector<8x96xf32> to vector<8x8xf32>
    %106 = vector.extract_strided_slice %42 {offsets = [0, 88], sizes = [8, 8], strides = [1, 1]} : vector<8x96xf32> to vector<8x8xf32>
    %cst_40 = arith.constant dense<0.000000e+00> : vector<8x8xf32>
    %107 = tpu.matmul %104, %105, %cst_40 {dimension_numbers = #tpu.dot_dimension_numbers<[1], [1], [0], [0], [0, 0, 1, 0], [], []>} : vector<8x8xf32>, vector<8x8xf32>, vector<8x8xf32> -> vector<8x8xf32>
    %108 = arith.addf %107, %40 : vector<8x8xf32>
    %cst_41 = arith.constant dense<0xFF800000> : vector<8xf32>
    %109 = vector.multi_reduction <maximumf>, %108, %cst_41 [1] : vector<8x8xf32> to vector<8xf32>
    %110 = vector.shape_cast %109 : vector<8xf32> to vector<8x1xf32>
    %111 = vector.broadcast %110 : vector<8x1xf32> to vector<8x8xf32>
    %112 = arith.subf %108, %111 : vector<8x8xf32>
    %113 = math.exp %112 : vector<8x8xf32>
    %cst_42 = arith.constant dense<0.000000e+00> : vector<8xf32>
    %114 = vector.multi_reduction <add>, %113, %cst_42 [1] : vector<8x8xf32> to vector<8xf32>
    %115 = vector.shape_cast %114 : vector<8xf32> to vector<8x1xf32>
    %116 = vector.broadcast %115 : vector<8x1xf32> to vector<8x8xf32>
    %117 = arith.divf %113, %116 : vector<8x8xf32>
    %cst_43 = arith.constant dense<0.000000e+00> : vector<8x8xf32>
    %118 = tpu.matmul %117, %106, %cst_43 {dimension_numbers = #tpu.dot_dimension_numbers<[1], [0], [0], [1], [0, 0, 1, 1], [], []>} : vector<8x8xf32>, vector<8x8xf32>, vector<8x8xf32> -> vector<8x8xf32>
    %119 = vector.extract_strided_slice %41 {offsets = [24, 0], sizes = [8, 32], strides = [1, 1]} : vector<32x32xf32> to vector<8x32xf32>
    %cst_44 = arith.constant dense<0.000000e+00> : vector<8x32xf32>
    %120 = tpu.matmul %118, %119, %cst_44 {dimension_numbers = #tpu.dot_dimension_numbers<[1], [0], [0], [1], [0, 0, 1, 1], [], []>} : vector<8x8xf32>, vector<8x32xf32>, vector<8x32xf32> -> vector<8x32xf32>
    %121 = arith.addf %101, %120 : vector<8x32xf32>
    %122 = vector.broadcast %3 : vector<1x32xf32> to vector<8x32xf32>
    %123 = arith.addf %121, %122 : vector<8x32xf32>
    %124 = vector.extract_strided_slice %0 {offsets = [0, 0], sizes = [8, 32], strides = [1, 1]} : vector<16x32xf32> to vector<8x32xf32>
    %125 = arith.addf %123, %124 : vector<8x32xf32>
    %126 = vector.extract_strided_slice %34 {offsets = [8, 0], sizes = [8, 96], strides = [1, 1]} : vector<16x96xf32> to vector<8x96xf32>
    %127 = vector.extract_strided_slice %126 {offsets = [0, 0], sizes = [8, 8], strides = [1, 1]} : vector<8x96xf32> to vector<8x8xf32>
    %cst_45 = arith.constant 0.353553385 : f32
    %128 = vector.broadcast %cst_45 : f32 to vector<8x8xf32>
    %129 = arith.mulf %127, %128 : vector<8x8xf32>
    %130 = vector.extract_strided_slice %126 {offsets = [0, 32], sizes = [8, 8], strides = [1, 1]} : vector<8x96xf32> to vector<8x8xf32>
    %131 = vector.extract_strided_slice %126 {offsets = [0, 64], sizes = [8, 8], strides = [1, 1]} : vector<8x96xf32> to vector<8x8xf32>
    %cst_46 = arith.constant dense<0.000000e+00> : vector<8x8xf32>
    %132 = tpu.matmul %129, %130, %cst_46 {dimension_numbers = #tpu.dot_dimension_numbers<[1], [1], [0], [0], [0, 0, 1, 0], [], []>} : vector<8x8xf32>, vector<8x8xf32>, vector<8x8xf32> -> vector<8x8xf32>
    %133 = arith.addf %132, %40 : vector<8x8xf32>
    %cst_47 = arith.constant dense<0xFF800000> : vector<8xf32>
    %134 = vector.multi_reduction <maximumf>, %133, %cst_47 [1] : vector<8x8xf32> to vector<8xf32>
    %135 = vector.shape_cast %134 : vector<8xf32> to vector<8x1xf32>
    %136 = vector.broadcast %135 : vector<8x1xf32> to vector<8x8xf32>
    %137 = arith.subf %133, %136 : vector<8x8xf32>
    %138 = math.exp %137 : vector<8x8xf32>
    %cst_48 = arith.constant dense<0.000000e+00> : vector<8xf32>
    %139 = vector.multi_reduction <add>, %138, %cst_48 [1] : vector<8x8xf32> to vector<8xf32>
    %140 = vector.shape_cast %139 : vector<8xf32> to vector<8x1xf32>
    %141 = vector.broadcast %140 : vector<8x1xf32> to vector<8x8xf32>
    %142 = arith.divf %138, %141 : vector<8x8xf32>
    %cst_49 = arith.constant dense<0.000000e+00> : vector<8x8xf32>
    %143 = tpu.matmul %142, %131, %cst_49 {dimension_numbers = #tpu.dot_dimension_numbers<[1], [0], [0], [1], [0, 0, 1, 1], [], []>} : vector<8x8xf32>, vector<8x8xf32>, vector<8x8xf32> -> vector<8x8xf32>
    %144 = vector.extract_strided_slice %41 {offsets = [0, 0], sizes = [8, 32], strides = [1, 1]} : vector<32x32xf32> to vector<8x32xf32>
    %cst_50 = arith.constant dense<0.000000e+00> : vector<8x32xf32>
    %145 = tpu.matmul %143, %144, %cst_50 {dimension_numbers = #tpu.dot_dimension_numbers<[1], [0], [0], [1], [0, 0, 1, 1], [], []>} : vector<8x8xf32>, vector<8x32xf32>, vector<8x32xf32> -> vector<8x32xf32>
    %146 = vector.extract_strided_slice %126 {offsets = [0, 8], sizes = [8, 8], strides = [1, 1]} : vector<8x96xf32> to vector<8x8xf32>
    %cst_51 = arith.constant 0.353553385 : f32
    %147 = vector.broadcast %cst_51 : f32 to vector<8x8xf32>
    %148 = arith.mulf %146, %147 : vector<8x8xf32>
    %149 = vector.extract_strided_slice %126 {offsets = [0, 40], sizes = [8, 8], strides = [1, 1]} : vector<8x96xf32> to vector<8x8xf32>
    %150 = vector.extract_strided_slice %126 {offsets = [0, 72], sizes = [8, 8], strides = [1, 1]} : vector<8x96xf32> to vector<8x8xf32>
    %cst_52 = arith.constant dense<0.000000e+00> : vector<8x8xf32>
    %151 = tpu.matmul %148, %149, %cst_52 {dimension_numbers = #tpu.dot_dimension_numbers<[1], [1], [0], [0], [0, 0, 1, 0], [], []>} : vector<8x8xf32>, vector<8x8xf32>, vector<8x8xf32> -> vector<8x8xf32>
    %152 = arith.addf %151, %40 : vector<8x8xf32>
    %cst_53 = arith.constant dense<0xFF800000> : vector<8xf32>
    %153 = vector.multi_reduction <maximumf>, %152, %cst_53 [1] : vector<8x8xf32> to vector<8xf32>
    %154 = vector.shape_cast %153 : vector<8xf32> to vector<8x1xf32>
    %155 = vector.broadcast %154 : vector<8x1xf32> to vector<8x8xf32>
    %156 = arith.subf %152, %155 : vector<8x8xf32>
    %157 = math.exp %156 : vector<8x8xf32>
    %cst_54 = arith.constant dense<0.000000e+00> : vector<8xf32>
    %158 = vector.multi_reduction <add>, %157, %cst_54 [1] : vector<8x8xf32> to vector<8xf32>
    %159 = vector.shape_cast %158 : vector<8xf32> to vector<8x1xf32>
    %160 = vector.broadcast %159 : vector<8x1xf32> to vector<8x8xf32>
    %161 = arith.divf %157, %160 : vector<8x8xf32>
    %cst_55 = arith.constant dense<0.000000e+00> : vector<8x8xf32>
    %162 = tpu.matmul %161, %150, %cst_55 {dimension_numbers = #tpu.dot_dimension_numbers<[1], [0], [0], [1], [0, 0, 1, 1], [], []>} : vector<8x8xf32>, vector<8x8xf32>, vector<8x8xf32> -> vector<8x8xf32>
    %163 = vector.extract_strided_slice %41 {offsets = [8, 0], sizes = [8, 32], strides = [1, 1]} : vector<32x32xf32> to vector<8x32xf32>
    %cst_56 = arith.constant dense<0.000000e+00> : vector<8x32xf32>
    %164 = tpu.matmul %162, %163, %cst_56 {dimension_numbers = #tpu.dot_dimension_numbers<[1], [0], [0], [1], [0, 0, 1, 1], [], []>} : vector<8x8xf32>, vector<8x32xf32>, vector<8x32xf32> -> vector<8x32xf32>
    %165 = arith.addf %145, %164 : vector<8x32xf32>
    %166 = vector.extract_strided_slice %126 {offsets = [0, 16], sizes = [8, 8], strides = [1, 1]} : vector<8x96xf32> to vector<8x8xf32>
    %cst_57 = arith.constant 0.353553385 : f32
    %167 = vector.broadcast %cst_57 : f32 to vector<8x8xf32>
    %168 = arith.mulf %166, %167 : vector<8x8xf32>
    %169 = vector.extract_strided_slice %126 {offsets = [0, 48], sizes = [8, 8], strides = [1, 1]} : vector<8x96xf32> to vector<8x8xf32>
    %170 = vector.extract_strided_slice %126 {offsets = [0, 80], sizes = [8, 8], strides = [1, 1]} : vector<8x96xf32> to vector<8x8xf32>
    %cst_58 = arith.constant dense<0.000000e+00> : vector<8x8xf32>
    %171 = tpu.matmul %168, %169, %cst_58 {dimension_numbers = #tpu.dot_dimension_numbers<[1], [1], [0], [0], [0, 0, 1, 0], [], []>} : vector<8x8xf32>, vector<8x8xf32>, vector<8x8xf32> -> vector<8x8xf32>
    %172 = arith.addf %171, %40 : vector<8x8xf32>
    %cst_59 = arith.constant dense<0xFF800000> : vector<8xf32>
    %173 = vector.multi_reduction <maximumf>, %172, %cst_59 [1] : vector<8x8xf32> to vector<8xf32>
    %174 = vector.shape_cast %173 : vector<8xf32> to vector<8x1xf32>
    %175 = vector.broadcast %174 : vector<8x1xf32> to vector<8x8xf32>
    %176 = arith.subf %172, %175 : vector<8x8xf32>
    %177 = math.exp %176 : vector<8x8xf32>
    %cst_60 = arith.constant dense<0.000000e+00> : vector<8xf32>
    %178 = vector.multi_reduction <add>, %177, %cst_60 [1] : vector<8x8xf32> to vector<8xf32>
    %179 = vector.shape_cast %178 : vector<8xf32> to vector<8x1xf32>
    %180 = vector.broadcast %179 : vector<8x1xf32> to vector<8x8xf32>
    %181 = arith.divf %177, %180 : vector<8x8xf32>
    %cst_61 = arith.constant dense<0.000000e+00> : vector<8x8xf32>
    %182 = tpu.matmul %181, %170, %cst_61 {dimension_numbers = #tpu.dot_dimension_numbers<[1], [0], [0], [1], [0, 0, 1, 1], [], []>} : vector<8x8xf32>, vector<8x8xf32>, vector<8x8xf32> -> vector<8x8xf32>
    %183 = vector.extract_strided_slice %41 {offsets = [16, 0], sizes = [8, 32], strides = [1, 1]} : vector<32x32xf32> to vector<8x32xf32>
    %cst_62 = arith.constant dense<0.000000e+00> : vector<8x32xf32>
    %184 = tpu.matmul %182, %183, %cst_62 {dimension_numbers = #tpu.dot_dimension_numbers<[1], [0], [0], [1], [0, 0, 1, 1], [], []>} : vector<8x8xf32>, vector<8x32xf32>, vector<8x32xf32> -> vector<8x32xf32>
    %185 = arith.addf %165, %184 : vector<8x32xf32>
    %186 = vector.extract_strided_slice %126 {offsets = [0, 24], sizes = [8, 8], strides = [1, 1]} : vector<8x96xf32> to vector<8x8xf32>
    %cst_63 = arith.constant 0.353553385 : f32
    %187 = vector.broadcast %cst_63 : f32 to vector<8x8xf32>
    %188 = arith.mulf %186, %187 : vector<8x8xf32>
    %189 = vector.extract_strided_slice %126 {offsets = [0, 56], sizes = [8, 8], strides = [1, 1]} : vector<8x96xf32> to vector<8x8xf32>
    %190 = vector.extract_strided_slice %126 {offsets = [0, 88], sizes = [8, 8], strides = [1, 1]} : vector<8x96xf32> to vector<8x8xf32>
    %cst_64 = arith.constant dense<0.000000e+00> : vector<8x8xf32>
    %191 = tpu.matmul %188, %189, %cst_64 {dimension_numbers = #tpu.dot_dimension_numbers<[1], [1], [0], [0], [0, 0, 1, 0], [], []>} : vector<8x8xf32>, vector<8x8xf32>, vector<8x8xf32> -> vector<8x8xf32>
    %192 = arith.addf %191, %40 : vector<8x8xf32>
    %cst_65 = arith.constant dense<0xFF800000> : vector<8xf32>
    %193 = vector.multi_reduction <maximumf>, %192, %cst_65 [1] : vector<8x8xf32> to vector<8xf32>
    %194 = vector.shape_cast %193 : vector<8xf32> to vector<8x1xf32>
    %195 = vector.broadcast %194 : vector<8x1xf32> to vector<8x8xf32>
    %196 = arith.subf %192, %195 : vector<8x8xf32>
    %197 = math.exp %196 : vector<8x8xf32>
    %cst_66 = arith.constant dense<0.000000e+00> : vector<8xf32>
    %198 = vector.multi_reduction <add>, %197, %cst_66 [1] : vector<8x8xf32> to vector<8xf32>
    %199 = vector.shape_cast %198 : vector<8xf32> to vector<8x1xf32>
    %200 = vector.broadcast %199 : vector<8x1xf32> to vector<8x8xf32>
    %201 = arith.divf %197, %200 : vector<8x8xf32>
    %cst_67 = arith.constant dense<0.000000e+00> : vector<8x8xf32>
    %202 = tpu.matmul %201, %190, %cst_67 {dimension_numbers = #tpu.dot_dimension_numbers<[1], [0], [0], [1], [0, 0, 1, 1], [], []>} : vector<8x8xf32>, vector<8x8xf32>, vector<8x8xf32> -> vector<8x8xf32>
    %203 = vector.extract_strided_slice %41 {offsets = [24, 0], sizes = [8, 32], strides = [1, 1]} : vector<32x32xf32> to vector<8x32xf32>
    %cst_68 = arith.constant dense<0.000000e+00> : vector<8x32xf32>
    %204 = tpu.matmul %202, %203, %cst_68 {dimension_numbers = #tpu.dot_dimension_numbers<[1], [0], [0], [1], [0, 0, 1, 1], [], []>} : vector<8x8xf32>, vector<8x32xf32>, vector<8x32xf32> -> vector<8x32xf32>
    %205 = arith.addf %185, %204 : vector<8x32xf32>
    %206 = vector.broadcast %3 : vector<1x32xf32> to vector<8x32xf32>
    %207 = arith.addf %205, %206 : vector<8x32xf32>
    %208 = vector.extract_strided_slice %0 {offsets = [8, 0], sizes = [8, 32], strides = [1, 1]} : vector<16x32xf32> to vector<8x32xf32>
    %209 = arith.addf %207, %208 : vector<8x32xf32>
    %210 = tpu.concatenate %125, %209 in 0 : vector<8x32xf32>, vector<8x32xf32> -> vector<16x32xf32>
    %cst_69 = arith.constant dense<0.000000e+00> : vector<16xf32>
    %211 = vector.multi_reduction <add>, %210, %cst_69 [1] : vector<16x32xf32> to vector<16xf32>
    %212 = vector.shape_cast %211 : vector<16xf32> to vector<16x1xf32>
    %cst_70 = arith.constant 3.200000e+01 : f32
    %213 = vector.broadcast %cst_70 : f32 to vector<16x1xf32>
    %214 = arith.divf %212, %213 : vector<16x1xf32>
    %215 = vector.broadcast %214 : vector<16x1xf32> to vector<16x32xf32>
    %216 = arith.subf %210, %215 : vector<16x32xf32>
    %217 = arith.mulf %216, %216 : vector<16x32xf32>
    %cst_71 = arith.constant dense<0.000000e+00> : vector<16xf32>
    %218 = vector.multi_reduction <add>, %217, %cst_71 [1] : vector<16x32xf32> to vector<16xf32>
    %219 = vector.shape_cast %218 : vector<16xf32> to vector<16x1xf32>
    %cst_72 = arith.constant 3.200000e+01 : f32
    %220 = vector.broadcast %cst_72 : f32 to vector<16x1xf32>
    %221 = arith.divf %219, %220 : vector<16x1xf32>
    %222 = vector.broadcast %214 : vector<16x1xf32> to vector<16x32xf32>
    %223 = arith.subf %210, %222 : vector<16x32xf32>
    %cst_73 = arith.constant 9.99999974E-6 : f32
    %224 = vector.broadcast %cst_73 : f32 to vector<16x1xf32>
    %225 = arith.addf %221, %224 : vector<16x1xf32>
    %226 = math.rsqrt %225 : vector<16x1xf32>
    %227 = vector.broadcast %226 : vector<16x1xf32> to vector<16x32xf32>
    %228 = arith.mulf %223, %227 : vector<16x32xf32>
    %229 = vector.broadcast %4 : vector<1x32xf32> to vector<16x32xf32>
    %230 = arith.mulf %228, %229 : vector<16x32xf32>
    %231 = vector.broadcast %5 : vector<1x32xf32> to vector<16x32xf32>
    %232 = arith.addf %230, %231 : vector<16x32xf32>
    %c0_74 = arith.constant 0 : index
    %c0_75 = arith.constant 0 : index
    %233 = vector.load %arg3[%c0_74, %c0_75] : memref<32x128xf32, #tpu.memory_space<vmem>>, vector<32x128xf32>
    %cst_76 = arith.constant dense<0.000000e+00> : vector<16x128xf32>
    %234 = tpu.matmul %232, %233, %cst_76 {dimension_numbers = #tpu.dot_dimension_numbers<[1], [0], [0], [1], [0, 0, 1, 1], [], []>} : vector<16x32xf32>, vector<32x128xf32>, vector<16x128xf32> -> vector<16x128xf32>
    %235 = vector.broadcast %8 : vector<1x128xf32> to vector<16x128xf32>
    %236 = arith.addf %234, %235 : vector<16x128xf32>
    %cst_77 = arith.constant 1.702000e+00 : f32
    %237 = vector.broadcast %cst_77 : f32 to vector<16x128xf32>
    %238 = arith.mulf %237, %236 : vector<16x128xf32>
    %239 = arith.negf %238 : vector<16x128xf32>
    %240 = math.exp %239 : vector<16x128xf32>
    %cst_78 = arith.constant 1.000000e+00 : f32
    %241 = vector.broadcast %cst_78 : f32 to vector<16x128xf32>
    %242 = arith.addf %241, %240 : vector<16x128xf32>
    %243 = arith.divf %241, %242 : vector<16x128xf32>
    %244 = arith.mulf %236, %243 : vector<16x128xf32>
    %c0_79 = arith.constant 0 : index
    %c0_80 = arith.constant 0 : index
    %245 = vector.load %arg4[%c0_79, %c0_80] : memref<128x32xf32, #tpu.memory_space<vmem>>, vector<128x32xf32>
    %cst_81 = arith.constant dense<0.000000e+00> : vector<16x32xf32>
    %246 = tpu.matmul %244, %245, %cst_81 {dimension_numbers = #tpu.dot_dimension_numbers<[1], [0], [0], [1], [0, 0, 1, 1], [], []>} : vector<16x128xf32>, vector<128x32xf32>, vector<16x32xf32> -> vector<16x32xf32>
    %247 = vector.broadcast %6 : vector<1x32xf32> to vector<16x32xf32>
    %248 = arith.addf %246, %247 : vector<16x32xf32>
    %249 = arith.addf %210, %248 : vector<16x32xf32>
    %c0_82 = arith.constant 0 : index
    %c0_83 = arith.constant 0 : index
    %250 = vector.load %arg6[%c0_82, %c0_83] : memref<16x32xf32, #tpu.memory_space<vmem>>, vector<16x32xf32>
    tpu.vector_store %arg6[%c0_82, %c0_83], %249 {strides = array<i32>} : memref<16x32xf32, #tpu.memory_space<vmem>>, vector<16x32xf32>,
    return
  }
}

</mosaic_0001>

<llo_original>
// kernel: tpu_custom_call.1
$region0: #{tpu_custom_call.1}
  #allocation0 [shape = 'u32[]', space=smem, size = 0x4, offset = 0x4, fixed_abs, tag = 'smem constant byte address 0x4 - core index']
  #allocation1 [shape = 'u32[144,128]{1,0:T(1,128)}', space=vmem, size = 0x12000, scoped, tag = 'internal scratch']
  %s0 = inlined_call_operand.vmem [shape: f32[16,32], index: 0, kind: input, shape index: {}]
  %s1 = inlined_call_operand.vmem [shape: f32[32,96], index: 1, kind: input, shape index: {}]
  %s2 = inlined_call_operand.vmem [shape: f32[32,32], index: 2, kind: input, shape index: {}]
  %s3 = inlined_call_operand.vmem [shape: f32[32,128], index: 3, kind: input, shape index: {}]
  %s4 = inlined_call_operand.vmem [shape: f32[128,32], index: 4, kind: input, shape index: {}]
  %s5 = inlined_call_operand.vmem [shape: f32[8,128], index: 5, kind: input, shape index: {}]
  %s6 = inlined_call_operand.hbm [shape: f32[16,32], index: 6, kind: output, shape index: {}]
  %s7 = sld [smem:[#allocation0]]
  $region34: #{tpu_custom_call.1} parent=0
    _
  %s9 = ssub.s32 1, %s7
  %s10 = scalar_select 0, %s9, %s7
  $region1: #{tpu_custom_call.1} parent=0
    #allocation2 [shape = 'u8[8192]{0}', space=vmem, size = 0x2000, scoped, tag = 'output window, operand 0, single buffered']
    #allocation3 [shape = 's32[1]{0}', space=sflag, size = 0x4, scoped, tag = 'scoped memory for tpu_custom_call.1']
    %11 = vsyncpa [#allocation3], 0
    // Predicated region
    $region2: #{tpu_custom_call.1} parent=1 // pred_check
      _
    $region3: #{tpu_custom_call.1} parent=1 // pred_check_branch
      %13 = sbr.rel (0) target = $region5
    $region4: #{tpu_custom_call.1} parent=1 // pred_region
      _
    $region5: #{tpu_custom_call.1} parent=1 // pred_fallthru
      _
    // Predicated region
    $region6: #{tpu_custom_call.1} parent=1 // pred_check
      _
    $region7: #{tpu_custom_call.1} parent=1 // pred_check_branch
      %15 = sbr.rel (0) target = $region9
    $region8: #{tpu_custom_call.1} parent=1 // pred_region
      _
    $region9: #{tpu_custom_call.1} parent=1 // pred_fallthru
      _
    // Predicated region
    $region10: #{tpu_custom_call.1} parent=1 // pred_check
      _
    $region11: #{tpu_custom_call.1} parent=1 // pred_check_branch
      %17 = sbr.rel (0) target = $region13
    $region12: #{tpu_custom_call.1} parent=1 // pred_region
      _
    $region13: #{tpu_custom_call.1} parent=1 // pred_fallthru
      _
    // Predicated region
    $region14: #{tpu_custom_call.1} parent=1 // pred_check
      _
    $region15: #{tpu_custom_call.1} parent=1 // pred_check_branch
      %19 = sbr.rel (0) target = $region17
    $region16: #{tpu_custom_call.1} parent=1 // pred_region
      _
    $region17: #{tpu_custom_call.1} parent=1 // pred_fallthru
      _
    // Predicated region
    $region18: #{tpu_custom_call.1} parent=1 // pred_check
      _
    $region19: #{tpu_custom_call.1} parent=1 // pred_check_branch
      %21 = sbr.rel (0) target = $region21
    $region20: #{tpu_custom_call.1} parent=1 // pred_region
      _
    $region21: #{tpu_custom_call.1} parent=1 // pred_fallthru
      _
    // Predicated region
    $region22: #{tpu_custom_call.1} parent=1 // pred_check
      _
    $region23: #{tpu_custom_call.1} parent=1 // pred_check_branch
      %23 = sbr.rel (0) target = $region25
    $region24: #{tpu_custom_call.1} parent=1 // pred_region
      _
    $region25: #{tpu_custom_call.1} parent=1 // pred_fallthru
      _
    %v24 = vld [vmem:[%s0] sm:$0xff]
    %v25 = vld [vmem:[%s0 + $0x8] sm:$0xff]
    %v26 = vld [vmem:[%s5] sm:$0x1]
    %v27 = vld [vmem:[%s5 + $0x1] sm:$0x1]
    %v28 = vld [vmem:[%s5 + $0x2] sm:$0x1]
    %v29 = vld [vmem:[%s5 + $0x3] sm:$0x1]
    %v30 = vld [vmem:[%s5 + $0x4] sm:$0x1]
    %v31 = vld [vmem:[%s5 + $0x5] sm:$0x1]
    %v32 = vld [vmem:[%s5 + $0x6] sm:$0x1]
    %v33 = vld [vmem:[%s5 + $0x7] sm:$0x1]
    %vm34 = vcmask 261120
    %v35 = vsel %vm34, %v24, 0.0
    %36 = vadd.xlane.f32.xlu0 %v35
    %v37 = vpop.xlane.xlu0 %36
    %v38 = vsel %vm34, %v25, 0.0
    %39 = vadd.xlane.f32.xlu0 %v38
    %v40 = vpop.xlane.xlu0 %39
    %v41 = vrcp.pop 32.0
    %v42 = vmul.f32 %v37, %v41
    %v43 = vmul.f32 %v40, %v41
    %v44 = vsub.f32 %v24, %v42
    %v45 = vsub.f32 %v25, %v43
    %v46 = vmul.f32 %v44, %v44
    %v47 = vmul.f32 %v45, %v45
    %v48 = vsel %vm34, %v46, 0.0
    %49 = vadd.xlane.f32.xlu0 %v48
    %v50 = vpop.xlane.xlu0 %49
    %v51 = vsel %vm34, %v47, 0.0
    %52 = vadd.xlane.f32.xlu0 %v51
    %v53 = vpop.xlane.xlu0 %52
    %v54 = vmul.f32 %v50, %v41
    %v55 = vmul.f32 %v53, %v41
    %v56 = vadd.f32 %v54, 1e-05
    %v57 = vadd.f32 %v55, 1e-05
    %v58 = vrsqrt.pop %v56
    %v59 = vrsqrt.pop %v57
    %v60 = vmul.f32 %v44, %v58
    %v61 = vmul.f32 %v45, %v59
    %v62 = vlaneseq
    %v63 = vshrl.u32 %v62, 7
    %v64 = vsub.s32 0, %v63
    %v65 = vrot.slane %v26, %v64
    %v66 = vmul.f32 %v60, %v65
    %v67 = vmul.f32 %v61, %v65
    %v68 = vlaneseq
    %v69 = vshrl.u32 %v68, 7
    %v70 = vsub.s32 0, %v69
    %v71 = vrot.slane %v27, %v70
    %v72 = vadd.f32 %v66, %v71
    %v73 = vadd.f32 %v67, %v71
    %v74 = vld [vmem:[%s1] sm:$0xff]
    %v75 = vld [vmem:[%s1 + $0x8] sm:$0xff]
    %v76 = vld [vmem:[%s1 + $0x10] sm:$0xff]
    %v77 = vld [vmem:[%s1 + $0x18] sm:$0xff]
    %v78 = vlaneseq
    %v79 = vshrl.u32 %v78, 7
    %v80 = vsub.s32 0, %v79
    %v81 = vrot.slane %v32, %v80
    %v83 = vsel %vm34, %v72, 0
    %v86 = vsel %vm34, %v73, 0
    %88 = vmatprep.subr.mxu0 0.0
    %89 = vmatpush1.msra.mxu0 %v74
    %90 = vmatprep.subr.mxu0 0.0
    %91 = vmatpush1.msra.mxu0 %v75
    %92 = vmatprep.subr.mxu0 0.0
    %93 = vmatpush1.msra.mxu0 %v76
    %94 = vmatprep.subr.mxu0 0.0
    %95 = vmatpush1.msra.mxu0 %v77
    %96 = vmatprep.subr.mxu0 0.0
    %97 = vmatpush1.msra.mxu0 0.0
    %98 = vmatprep.subr.mxu0 0.0
    %99 = vmatpush1.msra.mxu0 0.0
    %100 = vmatprep.subr.mxu0 0.0
    %101 = vmatpush1.msra.mxu0 0.0
    %102 = vmatprep.subr.mxu0 0.0
    %103 = vmatpush1.msra.mxu0 0.0
    %104 = vmatprep.subr.mxu0 0.0
    %105 = vmatpush1.msra.mxu0 0.0
    %106 = vmatprep.subr.mxu0 0.0
    %107 = vmatpush1.msra.mxu0 0.0
    %108 = vmatprep.subr.mxu0 0.0
    %109 = vmatpush1.msra.mxu0 0.0
    %110 = vmatprep.subr.mxu0 0.0
    %111 = vmatpush1.msra.mxu0 0.0
    %112 = vmatprep.subr.mxu0 0.0
    %113 = vmatpush1.msra.mxu0 0.0
    %114 = vmatprep.subr.mxu0 0.0
    %115 = vmatpush1.msra.mxu0 0.0
    %116 = vmatprep.subr.mxu0 0.0
    %117 = vmatpush1.msra.mxu0 0.0
    %118 = vmatprep.subr.mxu0 0.0
    %119 = vmatpush1.msra.mxu0 0.0
    %120 = vmatprep.subr.mxu0 0.0
    %121 = vmatpush1.msra.mxu0 0.0
    %122 = vmatprep.subr.mxu0 0.0
    %123 = vmatpush1.msra.mxu0 0.0
    %124 = vmatprep.subr.mxu0 0.0
    %125 = vmatpush1.msra.mxu0 0.0
    %126 = vmatprep.subr.mxu0 0.0
    %127 = vmatpush1.msra.mxu0 0.0
    %128 = vmatprep.subr.mxu0 0.0
    %129 = vmatpush1.msra.mxu0 0.0
    %130 = vmatprep.subr.mxu0 0.0
    %131 = vmatpush1.msra.mxu0 0.0
    %132 = vmatprep.subr.mxu0 0.0
    %133 = vmatpush1.msra.mxu0 0.0
    %134 = vmatprep.subr.mxu0 0.0
    %135 = vmatpush1.msra.mxu0 0.0
    %136 = vmatprep.subr.mxu0 0.0
    %137 = vmatpush1.msra.mxu0 0.0
    %138 = vmatprep.subr.mxu0 0.0
    %139 = vmatpush1.msra.mxu0 0.0
    %140 = vmatprep.subr.mxu0 0.0
    %141 = vmatpush1.msra.mxu0 0.0
    %142 = vmatprep.subr.mxu0 0.0
    %143 = vmatpush1.msra.mxu0 0.0
    %144 = vmatprep.subr.mxu0 0.0
    %145 = vmatpush1.msra.mxu0 0.0
    %146 = vmatprep.subr.mxu0 0.0
    %147 = vmatpush1.msra.mxu0 0.0
    %148 = vmatprep.subr.mxu0 0.0
    %149 = vmatpush1.msra.mxu0 0.0
    %150 = vmatprep.subr.mxu0 0.0
    %151 = vmatpush1.msra.mxu0 0.0
    %152 = vmatprep.mubr.f32.mxu0 0.0
    %153 = vmatmul.mubr.f32.gmra.mrb[0].mxu0 %v83
    %v154 = vpop.f32.mrb[0].mxu0
    %v155 = vadd.f32 %v81, %v154
    %v156 = vpop.f32.mrb[0].mxu0
    %157 = vmatprep.mubr.f32.mxu0 0.0
    %158 = vmatmul.mubr.f32.gmra.mrb[0].mxu0 %v86
    %v159 = vpop.f32.mrb[0].mxu0
    %v160 = vadd.f32 %v81, %v159
    %v161 = vpop.f32.mrb[0].mxu0
    %162 = vdwg.mxu0
    %v163 = vlaneseq
    %v164 = vshrl.u32 %v163, 7
    %v165 = vlaneseq
    %v166 = vand.u32 %v165, 127
    %vm167 = vcmp.gt.s32.totalorder %v166, %v164
    %v168 = vsel %vm167, -1e+30, 0.0
    %v169 = vld [vmem:[%s2] sm:$0xff]
    %v170 = vld [vmem:[%s2 + $0x8] sm:$0xff]
    %v171 = vld [vmem:[%s2 + $0x10] sm:$0xff]
    %v172 = vld [vmem:[%s2 + $0x18] sm:$0xff]
    %v173 = vmul.f32 %v155, 0.35355338
    %175 = vrot.lane.b32.xlu0 %v155, 96
    %v176 = vpop.permute.xlu0 %175
    %vm177 = vcmask 64512
    %v179 = vsel %vm177, %v173, 0
    %v181 = vsel %vm177, %v176, 0
    %183 = vmatprep.subr.mxu0 0.0
    %184 = vmatpush1.xpose.msra.mxu0 %v181
    %185 = vmatprep.subr.mxu0 0.0
    %186 = vmatpush1.xpose.msra.mxu0 0.0
    %187 = vmatprep.subr.mxu0 0.0
    %188 = vmatpush1.xpose.msra.mxu0 0.0
    %189 = vmatprep.subr.mxu0 0.0
    %190 = vmatpush1.xpose.msra.mxu0 0.0
    %191 = vmatprep.subr.mxu0 0.0
    %192 = vmatpush1.xpose.msra.mxu0 0.0
    %193 = vmatprep.subr.mxu0 0.0
    %194 = vmatpush1.xpose.msra.mxu0 0.0
    %195 = vmatprep.subr.mxu0 0.0
    %196 = vmatpush1.xpose.msra.mxu0 0.0
    %197 = vmatprep.subr.mxu0 0.0
    %198 = vmatpush1.xpose.msra.mxu0 0.0
    %199 = vmatprep.subr.mxu0 0.0
    %200 = vmatpush1.xpose.msra.mxu0 0.0
    %201 = vmatprep.subr.mxu0 0.0
    %202 = vmatpush1.xpose.msra.mxu0 0.0
    %203 = vmatprep.subr.mxu0 0.0
    %204 = vmatpush1.xpose.msra.mxu0 0.0
    %205 = vmatprep.subr.mxu0 0.0
    %206 = vmatpush1.xpose.msra.mxu0 0.0
    %207 = vmatprep.subr.mxu0 0.0
    %208 = vmatpush1.xpose.msra.mxu0 0.0
    %209 = vmatprep.subr.mxu0 0.0
    %210 = vmatpush1.xpose.msra.mxu0 0.0
    %211 = vmatprep.subr.mxu0 0.0
    %212 = vmatpush1.xpose.msra.mxu0 0.0
    %213 = vmatprep.subr.mxu0 0.0
    %214 = vmatpush1.xpose.msra.mxu0 0.0
    %215 = vmatprep.subr.mxu0 0.0
    %216 = vmatpush1.xpose.msra.mxu0 0.0
    %217 = vmatprep.subr.mxu0 0.0
    %218 = vmatpush1.xpose.msra.mxu0 0.0
    %219 = vmatprep.subr.mxu0 0.0
    %220 = vmatpush1.xpose.msra.mxu0 0.0
    %221 = vmatprep.subr.mxu0 0.0
    %222 = vmatpush1.xpose.msra.mxu0 0.0
    %223 = vmatprep.subr.mxu0 0.0
    %224 = vmatpush1.xpose.msra.mxu0 0.0
    %225 = vmatprep.subr.mxu0 0.0
    %226 = vmatpush1.xpose.msra.mxu0 0.0
    %227 = vmatprep.subr.mxu0 0.0
    %228 = vmatpush1.xpose.msra.mxu0 0.0
    %229 = vmatprep.subr.mxu0 0.0
    %230 = vmatpush1.xpose.msra.mxu0 0.0
    %231 = vmatprep.subr.mxu0 0.0
    %232 = vmatpush1.xpose.msra.mxu0 0.0
    %233 = vmatprep.subr.mxu0 0.0
    %234 = vmatpush1.xpose.msra.mxu0 0.0
    %235 = vmatprep.subr.mxu0 0.0
    %236 = vmatpush1.xpose.msra.mxu0 0.0
    %237 = vmatprep.subr.mxu0 0.0
    %238 = vmatpush1.xpose.msra.mxu0 0.0
    %239 = vmatprep.subr.mxu0 0.0
    %240 = vmatpush1.xpose.msra.mxu0 0.0
    %241 = vmatprep.subr.mxu0 0.0
    %242 = vmatpush1.xpose.msra.mxu0 0.0
    %243 = vmatprep.subr.mxu0 0.0
    %244 = vmatpush1.xpose.msra.mxu0 0.0
    %245 = vmatprep.subr.mxu0 0.0
    %246 = vmatpush1.xpose.msra.mxu0 0.0
    %247 = vmatprep.mubr.f32.mxu0 0.0
    %248 = vmatmul.mubr.f32.gmra.mrb[0].mxu0 %v179
    %v249 = vpop.f32.mrb[0].mxu0
    %v250 = vadd.f32 %v168, %v249
    %v251 = vpop.f32.mrb[0].mxu0
    %252 = vdwg.mxu0
    %v253 = vsel %vm177, %v250, -inf
    %254 = vmax.xlane.f32.xlu0 %v253
    %v255 = vpop.xlane.xlu0 %254
    %v256 = vsub.f32 %v250, %v255
    %v257 = vmul.f32 %v256, 1.442695
    %v258 = vpow.pop %v257
    %v259 = vsel %vm177, %v258, 0.0
    %260 = vadd.xlane.f32.xlu0 %v259
    %v261 = vpop.xlane.xlu0 %260
    %v262 = vrcp.pop %v261
    %v263 = vmul.f32 %v258, %v262
    %264 = vrot.lane.b32.xlu0 %v155, 64
    %v265 = vpop.permute.xlu0 %264
    %v268 = vsel %vm177, %v263, 0
    %270 = vmatprep.subr.mxu0 0.0
    %271 = vmatpush1.msra.mxu0 %v265
    %272 = vmatprep.subr.mxu0 0.0
    %273 = vmatpush1.msra.mxu0 0.0
    %274 = vmatprep.subr.mxu0 0.0
    %275 = vmatpush1.msra.mxu0 0.0
    %276 = vmatprep.subr.mxu0 0.0
    %277 = vmatpush1.msra.mxu0 0.0
    %278 = vmatprep.subr.mxu0 0.0
    %279 = vmatpush1.msra.mxu0 0.0
    %280 = vmatprep.subr.mxu0 0.0
    %281 = vmatpush1.msra.mxu0 0.0
    %282 = vmatprep.subr.mxu0 0.0
    %283 = vmatpush1.msra.mxu0 0.0
    %284 = vmatprep.subr.mxu0 0.0
    %285 = vmatpush1.msra.mxu0 0.0
    %286 = vmatprep.subr.mxu0 0.0
    %287 = vmatpush1.msra.mxu0 0.0
    %288 = vmatprep.subr.mxu0 0.0
    %289 = vmatpush1.msra.mxu0 0.0
    %290 = vmatprep.subr.mxu0 0.0
    %291 = vmatpush1.msra.mxu0 0.0
    %292 = vmatprep.subr.mxu0 0.0
    %293 = vmatpush1.msra.mxu0 0.0
    %294 = vmatprep.subr.mxu0 0.0
    %295 = vmatpush1.msra.mxu0 0.0
    %296 = vmatprep.subr.mxu0 0.0
    %297 = vmatpush1.msra.mxu0 0.0
    %298 = vmatprep.subr.mxu0 0.0
    %299 = vmatpush1.msra.mxu0 0.0
    %300 = vmatprep.subr.mxu0 0.0
    %301 = vmatpush1.msra.mxu0 0.0
    %302 = vmatprep.subr.mxu0 0.0
    %303 = vmatpush1.msra.mxu0 0.0
    %304 = vmatprep.subr.mxu0 0.0
    %305 = vmatpush1.msra.mxu0 0.0
    %306 = vmatprep.subr.mxu0 0.0
    %307 = vmatpush1.msra.mxu0 0.0
    %308 = vmatprep.subr.mxu0 0.0
    %309 = vmatpush1.msra.mxu0 0.0
    %310 = vmatprep.subr.mxu0 0.0
    %311 = vmatpush1.msra.mxu0 0.0
    %312 = vmatprep.subr.mxu0 0.0
    %313 = vmatpush1.msra.mxu0 0.0
    %314 = vmatprep.subr.mxu0 0.0
    %315 = vmatpush1.msra.mxu0 0.0
    %316 = vmatprep.subr.mxu0 0.0
    %317 = vmatpush1.msra.mxu0 0.0
    %318 = vmatprep.subr.mxu0 0.0
    %319 = vmatpush1.msra.mxu0 0.0
    %320 = vmatprep.subr.mxu0 0.0
    %321 = vmatpush1.msra.mxu0 0.0
    %322 = vmatprep.subr.mxu0 0.0
    %323 = vmatpush1.msra.mxu0 0.0
    %324 = vmatprep.subr.mxu0 0.0
    %325 = vmatpush1.msra.mxu0 0.0
    %326 = vmatprep.subr.mxu0 0.0
    %327 = vmatpush1.msra.mxu0 0.0
    %328 = vmatprep.subr.mxu0 0.0
    %329 = vmatpush1.msra.mxu0 0.0
    %330 = vmatprep.subr.mxu0 0.0
    %331 = vmatpush1.msra.mxu0 0.0
    %332 = vmatprep.subr.mxu0 0.0
    %333 = vmatpush1.msra.mxu0 0.0
    %334 = vmatprep.mubr.f32.mxu0 0.0
    %335 = vmatmul.mubr.f32.gmra.mrb[0].mxu0 %v268
    %v336 = vpop.f32.mrb[0].mxu0
    %v337 = vadd.f32 0.0, %v336
    %v338 = vpop.f32.mrb[0].mxu0
    %339 = vdwg.mxu0
    %340 = vrot.lane.b32.xlu0 %v173, 120
    %v341 = vpop.permute.xlu0 %340
    %342 = vrot.lane.b32.xlu0 %v155, 88
    %v343 = vpop.permute.xlu0 %342
    %v344 = vsel %vm177, %v341, 0
    %v346 = vsel %vm177, %v343, 0
    %348 = vmatprep.subr.mxu0 0.0
    %349 = vmatpush1.xpose.msra.mxu0 %v346
    %350 = vmatprep.subr.mxu0 0.0
    %351 = vmatpush1.xpose.msra.mxu0 0.0
    %352 = vmatprep.subr.mxu0 0.0
    %353 = vmatpush1.xpose.msra.mxu0 0.0
    %354 = vmatprep.subr.mxu0 0.0
    %355 = vmatpush1.xpose.msra.mxu0 0.0
    %356 = vmatprep.subr.mxu0 0.0
    %357 = vmatpush1.xpose.msra.mxu0 0.0
    %358 = vmatprep.subr.mxu0 0.0
    %359 = vmatpush1.xpose.msra.mxu0 0.0
    %360 = vmatprep.subr.mxu0 0.0
    %361 = vmatpush1.xpose.msra.mxu0 0.0
    %362 = vmatprep.subr.mxu0 0.0
    %363 = vmatpush1.xpose.msra.mxu0 0.0
    %364 = vmatprep.subr.mxu0 0.0
    %365 = vmatpush1.xpose.msra.mxu0 0.0
    %366 = vmatprep.subr.mxu0 0.0
    %367 = vmatpush1.xpose.msra.mxu0 0.0
    %368 = vmatprep.subr.mxu0 0.0
    %369 = vmatpush1.xpose.msra.mxu0 0.0
    %370 = vmatprep.subr.mxu0 0.0
    %371 = vmatpush1.xpose.msra.mxu0 0.0
    %372 = vmatprep.subr.mxu0 0.0
    %373 = vmatpush1.xpose.msra.mxu0 0.0
    %374 = vmatprep.subr.mxu0 0.0
    %375 = vmatpush1.xpose.msra.mxu0 0.0
    %376 = vmatprep.subr.mxu0 0.0
    %377 = vmatpush1.xpose.msra.mxu0 0.0
    %378 = vmatprep.subr.mxu0 0.0
    %379 = vmatpush1.xpose.msra.mxu0 0.0
    %380 = vmatprep.subr.mxu0 0.0
    %381 = vmatpush1.xpose.msra.mxu0 0.0
    %382 = vmatprep.subr.mxu0 0.0
    %383 = vmatpush1.xpose.msra.mxu0 0.0
    %384 = vmatprep.subr.mxu0 0.0
    %385 = vmatpush1.xpose.msra.mxu0 0.0
    %386 = vmatprep.subr.mxu0 0.0
    %387 = vmatpush1.xpose.msra.mxu0 0.0
    %388 = vmatprep.subr.mxu0 0.0
    %389 = vmatpush1.xpose.msra.mxu0 0.0
    %390 = vmatprep.subr.mxu0 0.0
    %391 = vmatpush1.xpose.msra.mxu0 0.0
    %392 = vmatprep.subr.mxu0 0.0
    %393 = vmatpush1.xpose.msra.mxu0 0.0
    %394 = vmatprep.subr.mxu0 0.0
    %395 = vmatpush1.xpose.msra.mxu0 0.0
    %396 = vmatprep.subr.mxu0 0.0
    %397 = vmatpush1.xpose.msra.mxu0 0.0
    %398 = vmatprep.subr.mxu0 0.0
    %399 = vmatpush1.xpose.msra.mxu0 0.0
    %400 = vmatprep.subr.mxu0 0.0
    %401 = vmatpush1.xpose.msra.mxu0 0.0
    %402 = vmatprep.subr.mxu0 0.0
    %403 = vmatpush1.xpose.msra.mxu0 0.0
    %404 = vmatprep.subr.mxu0 0.0
    %405 = vmatpush1.xpose.msra.mxu0 0.0
    %406 = vmatprep.subr.mxu0 0.0
    %407 = vmatpush1.xpose.msra.mxu0 0.0
    %408 = vmatprep.subr.mxu0 0.0
    %409 = vmatpush1.xpose.msra.mxu0 0.0
    %410 = vmatprep.subr.mxu0 0.0
    %411 = vmatpush1.xpose.msra.mxu0 0.0
    %412 = vmatprep.mubr.f32.mxu0 0.0
    %413 = vmatmul.mubr.f32.gmra.mrb[0].mxu0 %v344
    %v414 = vpop.f32.mrb[0].mxu0
    %v415 = vadd.f32 %v168, %v414
    %v416 = vpop.f32.mrb[0].mxu0
    %417 = vdwg.mxu0
    %v418 = vsel %vm177, %v415, -inf
    %419 = vmax.xlane.f32.xlu0 %v418
    %v420 = vpop.xlane.xlu0 %419
    %v421 = vsub.f32 %v415, %v420
    %v422 = vmul.f32 %v421, 1.442695
    %v423 = vpow.pop %v422
    %v424 = vsel %vm177, %v423, 0.0
    %425 = vadd.xlane.f32.xlu0 %v424
    %v426 = vpop.xlane.xlu0 %425
    %v427 = vrcp.pop %v426
    %v428 = vmul.f32 %v423, %v427
    %429 = vrot.lane.b32.xlu0 %v155, 56
    %v430 = vpop.permute.xlu0 %429
    %v433 = vsel %vm177, %v428, 0
    %435 = vmatprep.subr.mxu0 0.0
    %436 = vmatpush1.msra.mxu0 %v430
    %437 = vmatprep.subr.mxu0 0.0
    %438 = vmatpush1.msra.mxu0 0.0
    %439 = vmatprep.subr.mxu0 0.0
    %440 = vmatpush1.msra.mxu0 0.0
    %441 = vmatprep.subr.mxu0 0.0
    %442 = vmatpush1.msra.mxu0 0.0
    %443 = vmatprep.subr.mxu0 0.0
    %444 = vmatpush1.msra.mxu0 0.0
    %445 = vmatprep.subr.mxu0 0.0
    %446 = vmatpush1.msra.mxu0 0.0
    %447 = vmatprep.subr.mxu0 0.0
    %448 = vmatpush1.msra.mxu0 0.0
    %449 = vmatprep.subr.mxu0 0.0
    %450 = vmatpush1.msra.mxu0 0.0
    %451 = vmatprep.subr.mxu0 0.0
    %452 = vmatpush1.msra.mxu0 0.0
    %453 = vmatprep.subr.mxu0 0.0
    %454 = vmatpush1.msra.mxu0 0.0
    %455 = vmatprep.subr.mxu0 0.0
    %456 = vmatpush1.msra.mxu0 0.0
    %457 = vmatprep.subr.mxu0 0.0
    %458 = vmatpush1.msra.mxu0 0.0
    %459 = vmatprep.subr.mxu0 0.0
    %460 = vmatpush1.msra.mxu0 0.0
    %461 = vmatprep.subr.mxu0 0.0
    %462 = vmatpush1.msra.mxu0 0.0
    %463 = vmatprep.subr.mxu0 0.0
    %464 = vmatpush1.msra.mxu0 0.0
    %465 = vmatprep.subr.mxu0 0.0
    %466 = vmatpush1.msra.mxu0 0.0
    %467 = vmatprep.subr.mxu0 0.0
    %468 = vmatpush1.msra.mxu0 0.0
    %469 = vmatprep.subr.mxu0 0.0
    %470 = vmatpush1.msra.mxu0 0.0
    %471 = vmatprep.subr.mxu0 0.0
    %472 = vmatpush1.msra.mxu0 0.0
    %473 = vmatprep.subr.mxu0 0.0
    %474 = vmatpush1.msra.mxu0 0.0
    %475 = vmatprep.subr.mxu0 0.0
    %476 = vmatpush1.msra.mxu0 0.0
    %477 = vmatprep.subr.mxu0 0.0
    %478 = vmatpush1.msra.mxu0 0.0
    %479 = vmatprep.subr.mxu0 0.0
    %480 = vmatpush1.msra.mxu0 0.0
    %481 = vmatprep.subr.mxu0 0.0
    %482 = vmatpush1.msra.mxu0 0.0
    %483 = vmatprep.subr.mxu0 0.0
    %484 = vmatpush1.msra.mxu0 0.0
    %485 = vmatprep.subr.mxu0 0.0
    %486 = vmatpush1.msra.mxu0 0.0
    %487 = vmatprep.subr.mxu0 0.0
    %488 = vmatpush1.msra.mxu0 0.0
    %489 = vmatprep.subr.mxu0 0.0
    %490 = vmatpush1.msra.mxu0 0.0
    %491 = vmatprep.subr.mxu0 0.0
    %492 = vmatpush1.msra.mxu0 0.0
    %493 = vmatprep.subr.mxu0 0.0
    %494 = vmatpush1.msra.mxu0 0.0
    %495 = vmatprep.subr.mxu0 0.0
    %496 = vmatpush1.msra.mxu0 0.0
    %497 = vmatprep.subr.mxu0 0.0
    %498 = vmatpush1.msra.mxu0 0.0
    %499 = vmatprep.mubr.f32.mxu0 0.0
    %500 = vmatmul.mubr.f32.gmra.mrb[0].mxu0 %v433
    %v501 = vpop.f32.mrb[0].mxu0
    %v502 = vadd.f32 0.0, %v501
    %v503 = vpop.f32.mrb[0].mxu0
    %504 = vdwg.mxu0
    %v506 = vsel %vm177, %v502, 0
    %508 = vmatprep.subr.mxu0 0.0
    %509 = vmatpush1.msra.mxu0 %v170
    %510 = vmatprep.subr.mxu0 0.0
    %511 = vmatpush1.msra.mxu0 0.0
    %512 = vmatprep.subr.mxu0 0.0
    %513 = vmatpush1.msra.mxu0 0.0
    %514 = vmatprep.subr.mxu0 0.0
    %515 = vmatpush1.msra.mxu0 0.0
    %516 = vmatprep.subr.mxu0 0.0
    %517 = vmatpush1.msra.mxu0 0.0
    %518 = vmatprep.subr.mxu0 0.0
    %519 = vmatpush1.msra.mxu0 0.0
    %520 = vmatprep.subr.mxu0 0.0
    %521 = vmatpush1.msra.mxu0 0.0
    %522 = vmatprep.subr.mxu0 0.0
    %523 = vmatpush1.msra.mxu0 0.0
    %524 = vmatprep.subr.mxu0 0.0
    %525 = vmatpush1.msra.mxu0 0.0
    %526 = vmatprep.subr.mxu0 0.0
    %527 = vmatpush1.msra.mxu0 0.0
    %528 = vmatprep.subr.mxu0 0.0
    %529 = vmatpush1.msra.mxu0 0.0
    %530 = vmatprep.subr.mxu0 0.0
    %531 = vmatpush1.msra.mxu0 0.0
    %532 = vmatprep.subr.mxu0 0.0
    %533 = vmatpush1.msra.mxu0 0.0
    %534 = vmatprep.subr.mxu0 0.0
    %535 = vmatpush1.msra.mxu0 0.0
    %536 = vmatprep.subr.mxu0 0.0
    %537 = vmatpush1.msra.mxu0 0.0
    %538 = vmatprep.subr.mxu0 0.0
    %539 = vmatpush1.msra.mxu0 0.0
    %540 = vmatprep.subr.mxu0 0.0
    %541 = vmatpush1.msra.mxu0 0.0
    %542 = vmatprep.subr.mxu0 0.0
    %543 = vmatpush1.msra.mxu0 0.0
    %544 = vmatprep.subr.mxu0 0.0
    %545 = vmatpush1.msra.mxu0 0.0
    %546 = vmatprep.subr.mxu0 0.0
    %547 = vmatpush1.msra.mxu0 0.0
    %548 = vmatprep.subr.mxu0 0.0
    %549 = vmatpush1.msra.mxu0 0.0
    %550 = vmatprep.subr.mxu0 0.0
    %551 = vmatpush1.msra.mxu0 0.0
    %552 = vmatprep.subr.mxu0 0.0
    %553 = vmatpush1.msra.mxu0 0.0
    %554 = vmatprep.subr.mxu0 0.0
    %555 = vmatpush1.msra.mxu0 0.0
    %556 = vmatprep.subr.mxu0 0.0
    %557 = vmatpush1.msra.mxu0 0.0
    %558 = vmatprep.subr.mxu0 0.0
    %559 = vmatpush1.msra.mxu0 0.0
    %560 = vmatprep.subr.mxu0 0.0
    %561 = vmatpush1.msra.mxu0 0.0
    %562 = vmatprep.subr.mxu0 0.0
    %563 = vmatpush1.msra.mxu0 0.0
    %564 = vmatprep.subr.mxu0 0.0
    %565 = vmatpush1.msra.mxu0 0.0
    %566 = vmatprep.subr.mxu0 0.0
    %567 = vmatpush1.msra.mxu0 0.0
    %568 = vmatprep.subr.mxu0 0.0
    %569 = vmatpush1.msra.mxu0 0.0
    %570 = vmatprep.subr.mxu0 0.0
    %571 = vmatpush1.msra.mxu0 0.0
    %572 = vmatprep.mubr.f32.mxu0 0.0
    %573 = vmatmul.mubr.f32.gmra.mrb[0].mxu0 %v506
    %v574 = vpop.f32.mrb[0].mxu0
    %v575 = vadd.f32 0.0, %v574
    %v576 = vpop.f32.mrb[0].mxu0
    %577 = vdwg.mxu0
    %v579 = vsel %vm177, %v337, 0
    %581 = vmatprep.subr.mxu0 0.0
    %582 = vmatpush1.msra.mxu0 %v169
    %583 = vmatprep.subr.mxu0 0.0
    %584 = vmatpush1.msra.mxu0 0.0
    %585 = vmatprep.subr.mxu0 0.0
    %586 = vmatpush1.msra.mxu0 0.0
    %587 = vmatprep.subr.mxu0 0.0
    %588 = vmatpush1.msra.mxu0 0.0
    %589 = vmatprep.subr.mxu0 0.0
    %590 = vmatpush1.msra.mxu0 0.0
    %591 = vmatprep.subr.mxu0 0.0
    %592 = vmatpush1.msra.mxu0 0.0
    %593 = vmatprep.subr.mxu0 0.0
    %594 = vmatpush1.msra.mxu0 0.0
    %595 = vmatprep.subr.mxu0 0.0
    %596 = vmatpush1.msra.mxu0 0.0
    %597 = vmatprep.subr.mxu0 0.0
    %598 = vmatpush1.msra.mxu0 0.0
    %599 = vmatprep.subr.mxu0 0.0
    %600 = vmatpush1.msra.mxu0 0.0
    %601 = vmatprep.subr.mxu0 0.0
    %602 = vmatpush1.msra.mxu0 0.0
    %603 = vmatprep.subr.mxu0 0.0
    %604 = vmatpush1.msra.mxu0 0.0
    %605 = vmatprep.subr.mxu0 0.0
    %606 = vmatpush1.msra.mxu0 0.0
    %607 = vmatprep.subr.mxu0 0.0
    %608 = vmatpush1.msra.mxu0 0.0
    %609 = vmatprep.subr.mxu0 0.0
    %610 = vmatpush1.msra.mxu0 0.0
    %611 = vmatprep.subr.mxu0 0.0
    %612 = vmatpush1.msra.mxu0 0.0
    %613 = vmatprep.subr.mxu0 0.0
    %614 = vmatpush1.msra.mxu0 0.0
    %615 = vmatprep.subr.mxu0 0.0
    %616 = vmatpush1.msra.mxu0 0.0
    %617 = vmatprep.subr.mxu0 0.0
    %618 = vmatpush1.msra.mxu0 0.0
    %619 = vmatprep.subr.mxu0 0.0
    %620 = vmatpush1.msra.mxu0 0.0
    %621 = vmatprep.subr.mxu0 0.0
    %622 = vmatpush1.msra.mxu0 0.0
    %623 = vmatprep.subr.mxu0 0.0
    %624 = vmatpush1.msra.mxu0 0.0
    %625 = vmatprep.subr.mxu0 0.0
    %626 = vmatpush1.msra.mxu0 0.0
    %627 = vmatprep.subr.mxu0 0.0
    %628 = vmatpush1.msra.mxu0 0.0
    %629 = vmatprep.subr.mxu0 0.0
    %630 = vmatpush1.msra.mxu0 0.0
    %631 = vmatprep.subr.mxu0 0.0
    %632 = vmatpush1.msra.mxu0 0.0
    %633 = vmatprep.subr.mxu0 0.0
    %634 = vmatpush1.msra.mxu0 0.0
    %635 = vmatprep.subr.mxu0 0.0
    %636 = vmatpush1.msra.mxu0 0.0
    %637 = vmatprep.subr.mxu0 0.0
    %638 = vmatpush1.msra.mxu0 0.0
    %639 = vmatprep.subr.mxu0 0.0
    %640 = vmatpush1.msra.mxu0 0.0
    %641 = vmatprep.subr.mxu0 0.0
    %642 = vmatpush1.msra.mxu0 0.0
    %643 = vmatprep.subr.mxu0 0.0
    %644 = vmatpush1.msra.mxu0 0.0
    %645 = vmatprep.mubr.f32.mxu0 0.0
    %646 = vmatmul.mubr.f32.gmra.mrb[0].mxu0 %v579
    %v647 = vpop.f32.mrb[0].mxu0
    %v648 = vadd.f32 %v575, %v647
    %v649 = vpop.f32.mrb[0].mxu0
    %650 = vdwg.mxu0
    %651 = vrot.lane.b32.xlu0 %v173, 112
    %v652 = vpop.permute.xlu0 %651
    %653 = vrot.lane.b32.xlu0 %v155, 80
    %v654 = vpop.permute.xlu0 %653
    %v655 = vsel %vm177, %v652, 0
    %v657 = vsel %vm177, %v654, 0
    %659 = vmatprep.subr.mxu0 0.0
    %660 = vmatpush1.xpose.msra.mxu0 %v657
    %661 = vmatprep.subr.mxu0 0.0
    %662 = vmatpush1.xpose.msra.mxu0 0.0
    %663 = vmatprep.subr.mxu0 0.0
    %664 = vmatpush1.xpose.msra.mxu0 0.0
    %665 = vmatprep.subr.mxu0 0.0
    %666 = vmatpush1.xpose.msra.mxu0 0.0
    %667 = vmatprep.subr.mxu0 0.0
    %668 = vmatpush1.xpose.msra.mxu0 0.0
    %669 = vmatprep.subr.mxu0 0.0
    %670 = vmatpush1.xpose.msra.mxu0 0.0
    %671 = vmatprep.subr.mxu0 0.0
    %672 = vmatpush1.xpose.msra.mxu0 0.0
    %673 = vmatprep.subr.mxu0 0.0
    %674 = vmatpush1.xpose.msra.mxu0 0.0
    %675 = vmatprep.subr.mxu0 0.0
    %676 = vmatpush1.xpose.msra.mxu0 0.0
    %677 = vmatprep.subr.mxu0 0.0
    %678 = vmatpush1.xpose.msra.mxu0 0.0
    %679 = vmatprep.subr.mxu0 0.0
    %680 = vmatpush1.xpose.msra.mxu0 0.0
    %681 = vmatprep.subr.mxu0 0.0
    %682 = vmatpush1.xpose.msra.mxu0 0.0
    %683 = vmatprep.subr.mxu0 0.0
    %684 = vmatpush1.xpose.msra.mxu0 0.0
    %685 = vmatprep.subr.mxu0 0.0
    %686 = vmatpush1.xpose.msra.mxu0 0.0
    %687 = vmatprep.subr.mxu0 0.0
    %688 = vmatpush1.xpose.msra.mxu0 0.0
    %689 = vmatprep.subr.mxu0 0.0
    %690 = vmatpush1.xpose.msra.mxu0 0.0
    %691 = vmatprep.subr.mxu0 0.0
    %692 = vmatpush1.xpose.msra.mxu0 0.0
    %693 = vmatprep.subr.mxu0 0.0
    %694 = vmatpush1.xpose.msra.mxu0 0.0
    %695 = vmatprep.subr.mxu0 0.0
    %696 = vmatpush1.xpose.msra.mxu0 0.0
    %697 = vmatprep.subr.mxu0 0.0
    %698 = vmatpush1.xpose.msra.mxu0 0.0
    %699 = vmatprep.subr.mxu0 0.0
    %700 = vmatpush1.xpose.msra.mxu0 0.0
    %701 = vmatprep.subr.mxu0 0.0
    %702 = vmatpush1.xpose.msra.mxu0 0.0
    %703 = vmatprep.subr.mxu0 0.0
    %704 = vmatpush1.xpose.msra.mxu0 0.0
    %705 = vmatprep.subr.mxu0 0.0
    %706 = vmatpush1.xpose.msra.mxu0 0.0
    %707 = vmatprep.subr.mxu0 0.0
    %708 = vmatpush1.xpose.msra.mxu0 0.0
    %709 = vmatprep.subr.mxu0 0.0
    %710 = vmatpush1.xpose.msra.mxu0 0.0
    %711 = vmatprep.subr.mxu0 0.0
    %712 = vmatpush1.xpose.msra.mxu0 0.0
    %713 = vmatprep.subr.mxu0 0.0
    %714 = vmatpush1.xpose.msra.mxu0 0.0
    %715 = vmatprep.subr.mxu0 0.0
    %716 = vmatpush1.xpose.msra.mxu0 0.0
    %717 = vmatprep.subr.mxu0 0.0
    %718 = vmatpush1.xpose.msra.mxu0 0.0
    %719 = vmatprep.subr.mxu0 0.0
    %720 = vmatpush1.xpose.msra.mxu0 0.0
    %721 = vmatprep.subr.mxu0 0.0
    %722 = vmatpush1.xpose.msra.mxu0 0.0
    %723 = vmatprep.mubr.f32.mxu0 0.0
    %724 = vmatmul.mubr.f32.gmra.mrb[0].mxu0 %v655
    %v725 = vpop.f32.mrb[0].mxu0
    %v726 = vadd.f32 %v168, %v725
    %v727 = vpop.f32.mrb[0].mxu0
    %728 = vdwg.mxu0
    %v729 = vsel %vm177, %v726, -inf
    %730 = vmax.xlane.f32.xlu0 %v729
    %v731 = vpop.xlane.xlu0 %730
    %v732 = vsub.f32 %v726, %v731
    %v733 = vmul.f32 %v732, 1.442695
    %v734 = vpow.pop %v733
    %v735 = vsel %vm177, %v734, 0.0
    %736 = vadd.xlane.f32.xlu0 %v735
    %v737 = vpop.xlane.xlu0 %736
    %v738 = vrcp.pop %v737
    %v739 = vmul.f32 %v734, %v738
    %740 = vrot.lane.b32.xlu0 %v155, 48
    %v741 = vpop.permute.xlu0 %740
    %v744 = vsel %vm177, %v739, 0
    %746 = vmatprep.subr.mxu0 0.0
    %747 = vmatpush1.msra.mxu0 %v741
    %748 = vmatprep.subr.mxu0 0.0
    %749 = vmatpush1.msra.mxu0 0.0
    %750 = vmatprep.subr.mxu0 0.0
    %751 = vmatpush1.msra.mxu0 0.0
    %752 = vmatprep.subr.mxu0 0.0
    %753 = vmatpush1.msra.mxu0 0.0
    %754 = vmatprep.subr.mxu0 0.0
    %755 = vmatpush1.msra.mxu0 0.0
    %756 = vmatprep.subr.mxu0 0.0
    %757 = vmatpush1.msra.mxu0 0.0
    %758 = vmatprep.subr.mxu0 0.0
    %759 = vmatpush1.msra.mxu0 0.0
    %760 = vmatprep.subr.mxu0 0.0
    %761 = vmatpush1.msra.mxu0 0.0
    %762 = vmatprep.subr.mxu0 0.0
    %763 = vmatpush1.msra.mxu0 0.0
    %764 = vmatprep.subr.mxu0 0.0
    %765 = vmatpush1.msra.mxu0 0.0
    %766 = vmatprep.subr.mxu0 0.0
    %767 = vmatpush1.msra.mxu0 0.0
    %768 = vmatprep.subr.mxu0 0.0
    %769 = vmatpush1.msra.mxu0 0.0
    %770 = vmatprep.subr.mxu0 0.0
    %771 = vmatpush1.msra.mxu0 0.0
    %772 = vmatprep.subr.mxu0 0.0
    %773 = vmatpush1.msra.mxu0 0.0
    %774 = vmatprep.subr.mxu0 0.0
    %775 = vmatpush1.msra.mxu0 0.0
    %776 = vmatprep.subr.mxu0 0.0
    %777 = vmatpush1.msra.mxu0 0.0
    %778 = vmatprep.subr.mxu0 0.0
    %779 = vmatpush1.msra.mxu0 0.0
    %780 = vmatprep.subr.mxu0 0.0
    %781 = vmatpush1.msra.mxu0 0.0
    %782 = vmatprep.subr.mxu0 0.0
    %783 = vmatpush1.msra.mxu0 0.0
    %784 = vmatprep.subr.mxu0 0.0
    %785 = vmatpush1.msra.mxu0 0.0
    %786 = vmatprep.subr.mxu0 0.0
    %787 = vmatpush1.msra.mxu0 0.0
    %788 = vmatprep.subr.mxu0 0.0
    %789 = vmatpush1.msra.mxu0 0.0
    %790 = vmatprep.subr.mxu0 0.0
    %791 = vmatpush1.msra.mxu0 0.0
    %792 = vmatprep.subr.mxu0 0.0
    %793 = vmatpush1.msra.mxu0 0.0
    %794 = vmatprep.subr.mxu0 0.0
    %795 = vmatpush1.msra.mxu0 0.0
    %796 = vmatprep.subr.mxu0 0.0
    %797 = vmatpush1.msra.mxu0 0.0
    %798 = vmatprep.subr.mxu0 0.0
    %799 = vmatpush1.msra.mxu0 0.0
    %800 = vmatprep.subr.mxu0 0.0
    %801 = vmatpush1.msra.mxu0 0.0
    %802 = vmatprep.subr.mxu0 0.0
    %803 = vmatpush1.msra.mxu0 0.0
    %804 = vmatprep.subr.mxu0 0.0
    %805 = vmatpush1.msra.mxu0 0.0
    %806 = vmatprep.subr.mxu0 0.0
    %807 = vmatpush1.msra.mxu0 0.0
    %808 = vmatprep.subr.mxu0 0.0
    %809 = vmatpush1.msra.mxu0 0.0
    %810 = vmatprep.mubr.f32.mxu0 0.0
    %811 = vmatmul.mubr.f32.gmra.mrb[0].mxu0 %v744
    %v812 = vpop.f32.mrb[0].mxu0
    %v813 = vadd.f32 0.0, %v812
    %v814 = vpop.f32.mrb[0].mxu0
    %815 = vdwg.mxu0
    %v817 = vsel %vm177, %v813, 0
    %819 = vmatprep.subr.mxu0 0.0
    %820 = vmatpush1.msra.mxu0 %v171
    %821 = vmatprep.subr.mxu0 0.0
    %822 = vmatpush1.msra.mxu0 0.0
    %823 = vmatprep.subr.mxu0 0.0
    %824 = vmatpush1.msra.mxu0 0.0
    %825 = vmatprep.subr.mxu0 0.0
    %826 = vmatpush1.msra.mxu0 0.0
    %827 = vmatprep.subr.mxu0 0.0
    %828 = vmatpush1.msra.mxu0 0.0
    %829 = vmatprep.subr.mxu0 0.0
    %830 = vmatpush1.msra.mxu0 0.0
    %831 = vmatprep.subr.mxu0 0.0
    %832 = vmatpush1.msra.mxu0 0.0
    %833 = vmatprep.subr.mxu0 0.0
    %834 = vmatpush1.msra.mxu0 0.0
    %835 = vmatprep.subr.mxu0 0.0
    %836 = vmatpush1.msra.mxu0 0.0
    %837 = vmatprep.subr.mxu0 0.0
    %838 = vmatpush1.msra.mxu0 0.0
    %839 = vmatprep.subr.mxu0 0.0
    %840 = vmatpush1.msra.mxu0 0.0
    %841 = vmatprep.subr.mxu0 0.0
    %842 = vmatpush1.msra.mxu0 0.0
    %843 = vmatprep.subr.mxu0 0.0
    %844 = vmatpush1.msra.mxu0 0.0
    %845 = vmatprep.subr.mxu0 0.0
    %846 = vmatpush1.msra.mxu0 0.0
    %847 = vmatprep.subr.mxu0 0.0
    %848 = vmatpush1.msra.mxu0 0.0
    %849 = vmatprep.subr.mxu0 0.0
    %850 = vmatpush1.msra.mxu0 0.0
    %851 = vmatprep.subr.mxu0 0.0
    %852 = vmatpush1.msra.mxu0 0.0
    %853 = vmatprep.subr.mxu0 0.0
    %854 = vmatpush1.msra.mxu0 0.0
    %855 = vmatprep.subr.mxu0 0.0
    %856 = vmatpush1.msra.mxu0 0.0
    %857 = vmatprep.subr.mxu0 0.0
    %858 = vmatpush1.msra.mxu0 0.0
    %859 = vmatprep.subr.mxu0 0.0
    %860 = vmatpush1.msra.mxu0 0.0
    %861 = vmatprep.subr.mxu0 0.0
    %862 = vmatpush1.msra.mxu0 0.0
    %863 = vmatprep.subr.mxu0 0.0
    %864 = vmatpush1.msra.mxu0 0.0
    %865 = vmatprep.subr.mxu0 0.0
    %866 = vmatpush1.msra.mxu0 0.0
    %867 = vmatprep.subr.mxu0 0.0
    %868 = vmatpush1.msra.mxu0 0.0
    %869 = vmatprep.subr.mxu0 0.0
    %870 = vmatpush1.msra.mxu0 0.0
    %871 = vmatprep.subr.mxu0 0.0
    %872 = vmatpush1.msra.mxu0 0.0
    %873 = vmatprep.subr.mxu0 0.0
    %874 = vmatpush1.msra.mxu0 0.0
    %875 = vmatprep.subr.mxu0 0.0
    %876 = vmatpush1.msra.mxu0 0.0
    %877 = vmatprep.subr.mxu0 0.0
    %878 = vmatpush1.msra.mxu0 0.0
    %879 = vmatprep.subr.mxu0 0.0
    %880 = vmatpush1.msra.mxu0 0.0
    %881 = vmatprep.subr.mxu0 0.0
    %882 = vmatpush1.msra.mxu0 0.0
    %883 = vmatprep.mubr.f32.mxu0 0.0
    %884 = vmatmul.mubr.f32.gmra.mrb[0].mxu0 %v817
    %v885 = vpop.f32.mrb[0].mxu0
    %v886 = vadd.f32 0.0, %v885
    %v887 = vpop.f32.mrb[0].mxu0
    %888 = vdwg.mxu0
    %v889 = vadd.f32 %v648, %v886
    %890 = vrot.lane.b32.xlu0 %v173, 104
    %v891 = vpop.permute.xlu0 %890
    %892 = vrot.lane.b32.xlu0 %v155, 72
    %v893 = vpop.permute.xlu0 %892
    %v894 = vsel %vm177, %v891, 0
    %v896 = vsel %vm177, %v893, 0
    %898 = vmatprep.subr.mxu0 0.0
    %899 = vmatpush1.xpose.msra.mxu0 %v896
    %900 = vmatprep.subr.mxu0 0.0
    %901 = vmatpush1.xpose.msra.mxu0 0.0
    %902 = vmatprep.subr.mxu0 0.0
    %903 = vmatpush1.xpose.msra.mxu0 0.0
    %904 = vmatprep.subr.mxu0 0.0
    %905 = vmatpush1.xpose.msra.mxu0 0.0
    %906 = vmatprep.subr.mxu0 0.0
    %907 = vmatpush1.xpose.msra.mxu0 0.0
    %908 = vmatprep.subr.mxu0 0.0
    %909 = vmatpush1.xpose.msra.mxu0 0.0
    %910 = vmatprep.subr.mxu0 0.0
    %911 = vmatpush1.xpose.msra.mxu0 0.0
    %912 = vmatprep.subr.mxu0 0.0
    %913 = vmatpush1.xpose.msra.mxu0 0.0
    %914 = vmatprep.subr.mxu0 0.0
    %915 = vmatpush1.xpose.msra.mxu0 0.0
    %916 = vmatprep.subr.mxu0 0.0
    %917 = vmatpush1.xpose.msra.mxu0 0.0
    %918 = vmatprep.subr.mxu0 0.0
    %919 = vmatpush1.xpose.msra.mxu0 0.0
    %920 = vmatprep.subr.mxu0 0.0
    %921 = vmatpush1.xpose.msra.mxu0 0.0
    %922 = vmatprep.subr.mxu0 0.0
    %923 = vmatpush1.xpose.msra.mxu0 0.0
    %924 = vmatprep.subr.mxu0 0.0
    %925 = vmatpush1.xpose.msra.mxu0 0.0
    %926 = vmatprep.subr.mxu0 0.0
    %927 = vmatpush1.xpose.msra.mxu0 0.0
    %928 = vmatprep.subr.mxu0 0.0
    %929 = vmatpush1.xpose.msra.mxu0 0.0
    %930 = vmatprep.subr.mxu0 0.0
    %931 = vmatpush1.xpose.msra.mxu0 0.0
    %932 = vmatprep.subr.mxu0 0.0
    %933 = vmatpush1.xpose.msra.mxu0 0.0
    %934 = vmatprep.subr.mxu0 0.0
    %935 = vmatpush1.xpose.msra.mxu0 0.0
    %936 = vmatprep.subr.mxu0 0.0
    %937 = vmatpush1.xpose.msra.mxu0 0.0
    %938 = vmatprep.subr.mxu0 0.0
    %939 = vmatpush1.xpose.msra.mxu0 0.0
    %940 = vmatprep.subr.mxu0 0.0
    %941 = vmatpush1.xpose.msra.mxu0 0.0
    %942 = vmatprep.subr.mxu0 0.0
    %943 = vmatpush1.xpose.msra.mxu0 0.0
    %944 = vmatprep.subr.mxu0 0.0
    %945 = vmatpush1.xpose.msra.mxu0 0.0
    %946 = vmatprep.subr.mxu0 0.0
    %947 = vmatpush1.xpose.msra.mxu0 0.0
    %948 = vmatprep.subr.mxu0 0.0
    %949 = vmatpush1.xpose.msra.mxu0 0.0
    %950 = vmatprep.subr.mxu0 0.0
    %951 = vmatpush1.xpose.msra.mxu0 0.0
    %952 = vmatprep.subr.mxu0 0.0
    %953 = vmatpush1.xpose.msra.mxu0 0.0
    %954 = vmatprep.subr.mxu0 0.0
    %955 = vmatpush1.xpose.msra.mxu0 0.0
    %956 = vmatprep.subr.mxu0 0.0
    %957 = vmatpush1.xpose.msra.mxu0 0.0
    %958 = vmatprep.subr.mxu0 0.0
    %959 = vmatpush1.xpose.msra.mxu0 0.0
    %960 = vmatprep.subr.mxu0 0.0
    %961 = vmatpush1.xpose.msra.mxu0 0.0
    %962 = vmatprep.mubr.f32.mxu0 0.0
    %963 = vmatmul.mubr.f32.gmra.mrb[0].mxu0 %v894
    %v964 = vpop.f32.mrb[0].mxu0
    %v965 = vadd.f32 %v168, %v964
    %v966 = vpop.f32.mrb[0].mxu0
    %967 = vdwg.mxu0
    %v968 = vsel %vm177, %v965, -inf
    %969 = vmax.xlane.f32.xlu0 %v968
    %v970 = vpop.xlane.xlu0 %969
    %v971 = vsub.f32 %v965, %v970
    %v972 = vmul.f32 %v971, 1.442695
    %v973 = vpow.pop %v972
    %v974 = vsel %vm177, %v973, 0.0
    %975 = vadd.xlane.f32.xlu0 %v974
    %v976 = vpop.xlane.xlu0 %975
    %v977 = vrcp.pop %v976
    %v978 = vmul.f32 %v973, %v977
    %979 = vrot.lane.b32.xlu0 %v155, 40
    %v980 = vpop.permute.xlu0 %979
    %v983 = vsel %vm177, %v978, 0
    %985 = vmatprep.subr.mxu0 0.0
    %986 = vmatpush1.msra.mxu0 %v980
    %987 = vmatprep.subr.mxu0 0.0
    %988 = vmatpush1.msra.mxu0 0.0
    %989 = vmatprep.subr.mxu0 0.0
    %990 = vmatpush1.msra.mxu0 0.0
    %991 = vmatprep.subr.mxu0 0.0
    %992 = vmatpush1.msra.mxu0 0.0
    %993 = vmatprep.subr.mxu0 0.0
    %994 = vmatpush1.msra.mxu0 0.0
    %995 = vmatprep.subr.mxu0 0.0
    %996 = vmatpush1.msra.mxu0 0.0
    %997 = vmatprep.subr.mxu0 0.0
    %998 = vmatpush1.msra.mxu0 0.0
    %999 = vmatprep.subr.mxu0 0.0
    %1000 = vmatpush1.msra.mxu0 0.0
    %1001 = vmatprep.subr.mxu0 0.0
    %1002 = vmatpush1.msra.mxu0 0.0
    %1003 = vmatprep.subr.mxu0 0.0
    %1004 = vmatpush1.msra.mxu0 0.0
    %1005 = vmatprep.subr.mxu0 0.0
    %1006 = vmatpush1.msra.mxu0 0.0
    %1007 = vmatprep.subr.mxu0 0.0
    %1008 = vmatpush1.msra.mxu0 0.0
    %1009 = vmatprep.subr.mxu0 0.0
    %1010 = vmatpush1.msra.mxu0 0.0
    %1011 = vmatprep.subr.mxu0 0.0
    %1012 = vmatpush1.msra.mxu0 0.0
    %1013 = vmatprep.subr.mxu0 0.0
    %1014 = vmatpush1.msra.mxu0 0.0
    %1015 = vmatprep.subr.mxu0 0.0
    %1016 = vmatpush1.msra.mxu0 0.0
    %1017 = vmatprep.subr.mxu0 0.0
    %1018 = vmatpush1.msra.mxu0 0.0
    %1019 = vmatprep.subr.mxu0 0.0
    %1020 = vmatpush1.msra.mxu0 0.0
    %1021 = vmatprep.subr.mxu0 0.0
    %1022 = vmatpush1.msra.mxu0 0.0
    %1023 = vmatprep.subr.mxu0 0.0
    %1024 = vmatpush1.msra.mxu0 0.0
    %1025 = vmatprep.subr.mxu0 0.0
    %1026 = vmatpush1.msra.mxu0 0.0
    %1027 = vmatprep.subr.mxu0 0.0
    %1028 = vmatpush1.msra.mxu0 0.0
    %1029 = vmatprep.subr.mxu0 0.0
    %1030 = vmatpush1.msra.mxu0 0.0
    %1031 = vmatprep.subr.mxu0 0.0
    %1032 = vmatpush1.msra.mxu0 0.0
    %1033 = vmatprep.subr.mxu0 0.0
    %1034 = vmatpush1.msra.mxu0 0.0
    %1035 = vmatprep.subr.mxu0 0.0
    %1036 = vmatpush1.msra.mxu0 0.0
    %1037 = vmatprep.subr.mxu0 0.0
    %1038 = vmatpush1.msra.mxu0 0.0
    %1039 = vmatprep.subr.mxu0 0.0
    %1040 = vmatpush1.msra.mxu0 0.0
    %1041 = vmatprep.subr.mxu0 0.0
    %1042 = vmatpush1.msra.mxu0 0.0
    %1043 = vmatprep.subr.mxu0 0.0
    %1044 = vmatpush1.msra.mxu0 0.0
    %1045 = vmatprep.subr.mxu0 0.0
    %1046 = vmatpush1.msra.mxu0 0.0
    %1047 = vmatprep.subr.mxu0 0.0
    %1048 = vmatpush1.msra.mxu0 0.0
    %1049 = vmatprep.mubr.f32.mxu0 0.0
    %1050 = vmatmul.mubr.f32.gmra.mrb[0].mxu0 %v983
    %v1051 = vpop.f32.mrb[0].mxu0
    %v1052 = vadd.f32 0.0, %v1051
    %v1053 = vpop.f32.mrb[0].mxu0
    %1054 = vdwg.mxu0
    %v1056 = vsel %vm177, %v1052, 0
    %1058 = vmatprep.subr.mxu0 0.0
    %1059 = vmatpush1.msra.mxu0 %v172
    %1060 = vmatprep.subr.mxu0 0.0
    %1061 = vmatpush1.msra.mxu0 0.0
    %1062 = vmatprep.subr.mxu0 0.0
    %1063 = vmatpush1.msra.mxu0 0.0
    %1064 = vmatprep.subr.mxu0 0.0
    %1065 = vmatpush1.msra.mxu0 0.0
    %1066 = vmatprep.subr.mxu0 0.0
    %1067 = vmatpush1.msra.mxu0 0.0
    %1068 = vmatprep.subr.mxu0 0.0
    %1069 = vmatpush1.msra.mxu0 0.0
    %1070 = vmatprep.subr.mxu0 0.0
    %1071 = vmatpush1.msra.mxu0 0.0
    %1072 = vmatprep.subr.mxu0 0.0
    %1073 = vmatpush1.msra.mxu0 0.0
    %1074 = vmatprep.subr.mxu0 0.0
    %1075 = vmatpush1.msra.mxu0 0.0
    %1076 = vmatprep.subr.mxu0 0.0
    %1077 = vmatpush1.msra.mxu0 0.0
    %1078 = vmatprep.subr.mxu0 0.0
    %1079 = vmatpush1.msra.mxu0 0.0
    %1080 = vmatprep.subr.mxu0 0.0
    %1081 = vmatpush1.msra.mxu0 0.0
    %1082 = vmatprep.subr.mxu0 0.0
    %1083 = vmatpush1.msra.mxu0 0.0
    %1084 = vmatprep.subr.mxu0 0.0
    %1085 = vmatpush1.msra.mxu0 0.0
    %1086 = vmatprep.subr.mxu0 0.0
    %1087 = vmatpush1.msra.mxu0 0.0
    %1088 = vmatprep.subr.mxu0 0.0
    %1089 = vmatpush1.msra.mxu0 0.0
    %1090 = vmatprep.subr.mxu0 0.0
    %1091 = vmatpush1.msra.mxu0 0.0
    %1092 = vmatprep.subr.mxu0 0.0
    %1093 = vmatpush1.msra.mxu0 0.0
    %1094 = vmatprep.subr.mxu0 0.0
    %1095 = vmatpush1.msra.mxu0 0.0
    %1096 = vmatprep.subr.mxu0 0.0
    %1097 = vmatpush1.msra.mxu0 0.0
    %1098 = vmatprep.subr.mxu0 0.0
    %1099 = vmatpush1.msra.mxu0 0.0
    %1100 = vmatprep.subr.mxu0 0.0
    %1101 = vmatpush1.msra.mxu0 0.0
    %1102 = vmatprep.subr.mxu0 0.0
    %1103 = vmatpush1.msra.mxu0 0.0
    %1104 = vmatprep.subr.mxu0 0.0
    %1105 = vmatpush1.msra.mxu0 0.0
    %1106 = vmatprep.subr.mxu0 0.0
    %1107 = vmatpush1.msra.mxu0 0.0
    %1108 = vmatprep.subr.mxu0 0.0
    %1109 = vmatpush1.msra.mxu0 0.0
    %1110 = vmatprep.subr.mxu0 0.0
    %1111 = vmatpush1.msra.mxu0 0.0
    %1112 = vmatprep.subr.mxu0 0.0
    %1113 = vmatpush1.msra.mxu0 0.0
    %1114 = vmatprep.subr.mxu0 0.0
    %1115 = vmatpush1.msra.mxu0 0.0
    %1116 = vmatprep.subr.mxu0 0.0
    %1117 = vmatpush1.msra.mxu0 0.0
    %1118 = vmatprep.subr.mxu0 0.0
    %1119 = vmatpush1.msra.mxu0 0.0
    %1120 = vmatprep.subr.mxu0 0.0
    %1121 = vmatpush1.msra.mxu0 0.0
    %1122 = vmatprep.mubr.f32.mxu0 0.0
    %1123 = vmatmul.mubr.f32.gmra.mrb[0].mxu0 %v1056
    %v1124 = vpop.f32.mrb[0].mxu0
    %v1125 = vadd.f32 0.0, %v1124
    %v1126 = vpop.f32.mrb[0].mxu0
    %1127 = vdwg.mxu0
    %v1128 = vadd.f32 %v889, %v1125
    %v1129 = vlaneseq
    %v1130 = vshrl.u32 %v1129, 7
    %v1131 = vsub.s32 0, %v1130
    %v1132 = vrot.slane %v28, %v1131
    %v1133 = vadd.f32 %v1128, %v1132
    %v1134 = vadd.f32 %v1133, %v24
    %v1135 = vmul.f32 %v160, 0.35355338
    %1137 = vrot.lane.b32.xlu0 %v160, 96
    %v1138 = vpop.permute.xlu0 %1137
    %v1140 = vsel %vm177, %v1135, 0
    %v1142 = vsel %vm177, %v1138, 0
    %1144 = vmatprep.subr.mxu0 0.0
    %1145 = vmatpush1.xpose.msra.mxu0 %v1142
    %1146 = vmatprep.subr.mxu0 0.0
    %1147 = vmatpush1.xpose.msra.mxu0 0.0
    %1148 = vmatprep.subr.mxu0 0.0
    %1149 = vmatpush1.xpose.msra.mxu0 0.0
    %1150 = vmatprep.subr.mxu0 0.0
    %1151 = vmatpush1.xpose.msra.mxu0 0.0
    %1152 = vmatprep.subr.mxu0 0.0
    %1153 = vmatpush1.xpose.msra.mxu0 0.0
    %1154 = vmatprep.subr.mxu0 0.0
    %1155 = vmatpush1.xpose.msra.mxu0 0.0
    %1156 = vmatprep.subr.mxu0 0.0
    %1157 = vmatpush1.xpose.msra.mxu0 0.0
    %1158 = vmatprep.subr.mxu0 0.0
    %1159 = vmatpush1.xpose.msra.mxu0 0.0
    %1160 = vmatprep.subr.mxu0 0.0
    %1161 = vmatpush1.xpose.msra.mxu0 0.0
    %1162 = vmatprep.subr.mxu0 0.0
    %1163 = vmatpush1.xpose.msra.mxu0 0.0
    %1164 = vmatprep.subr.mxu0 0.0
    %1165 = vmatpush1.xpose.msra.mxu0 0.0
    %1166 = vmatprep.subr.mxu0 0.0
    %1167 = vmatpush1.xpose.msra.mxu0 0.0
    %1168 = vmatprep.subr.mxu0 0.0
    %1169 = vmatpush1.xpose.msra.mxu0 0.0
    %1170 = vmatprep.subr.mxu0 0.0
    %1171 = vmatpush1.xpose.msra.mxu0 0.0
    %1172 = vmatprep.subr.mxu0 0.0
    %1173 = vmatpush1.xpose.msra.mxu0 0.0
    %1174 = vmatprep.subr.mxu0 0.0
    %1175 = vmatpush1.xpose.msra.mxu0 0.0
    %1176 = vmatprep.subr.mxu0 0.0
    %1177 = vmatpush1.xpose.msra.mxu0 0.0
    %1178 = vmatprep.subr.mxu0 0.0
    %1179 = vmatpush1.xpose.msra.mxu0 0.0
    %1180 = vmatprep.subr.mxu0 0.0
    %1181 = vmatpush1.xpose.msra.mxu0 0.0
    %1182 = vmatprep.subr.mxu0 0.0
    %1183 = vmatpush1.xpose.msra.mxu0 0.0
    %1184 = vmatprep.subr.mxu0 0.0
    %1185 = vmatpush1.xpose.msra.mxu0 0.0
    %1186 = vmatprep.subr.mxu0 0.0
    %1187 = vmatpush1.xpose.msra.mxu0 0.0
    %1188 = vmatprep.subr.mxu0 0.0
    %1189 = vmatpush1.xpose.msra.mxu0 0.0
    %1190 = vmatprep.subr.mxu0 0.0
    %1191 = vmatpush1.xpose.msra.mxu0 0.0
    %1192 = vmatprep.subr.mxu0 0.0
    %1193 = vmatpush1.xpose.msra.mxu0 0.0
    %1194 = vmatprep.subr.mxu0 0.0
    %1195 = vmatpush1.xpose.msra.mxu0 0.0
    %1196 = vmatprep.subr.mxu0 0.0
    %1197 = vmatpush1.xpose.msra.mxu0 0.0
    %1198 = vmatprep.subr.mxu0 0.0
    %1199 = vmatpush1.xpose.msra.mxu0 0.0
    %1200 = vmatprep.subr.mxu0 0.0
    %1201 = vmatpush1.xpose.msra.mxu0 0.0
    %1202 = vmatprep.subr.mxu0 0.0
    %1203 = vmatpush1.xpose.msra.mxu0 0.0
    %1204 = vmatprep.subr.mxu0 0.0
    %1205 = vmatpush1.xpose.msra.mxu0 0.0
    %1206 = vmatprep.subr.mxu0 0.0
    %1207 = vmatpush1.xpose.msra.mxu0 0.0
    %1208 = vmatprep.mubr.f32.mxu0 0.0
    %1209 = vmatmul.mubr.f32.gmra.mrb[0].mxu0 %v1140
    %v1210 = vpop.f32.mrb[0].mxu0
    %v1211 = vadd.f32 %v168, %v1210
    %v1212 = vpop.f32.mrb[0].mxu0
    %1213 = vdwg.mxu0
    %v1214 = vsel %vm177, %v1211, -inf
    %1215 = vmax.xlane.f32.xlu0 %v1214
    %v1216 = vpop.xlane.xlu0 %1215
    %v1217 = vsub.f32 %v1211, %v1216
    %v1218 = vmul.f32 %v1217, 1.442695
    %v1219 = vpow.pop %v1218
    %v1220 = vsel %vm177, %v1219, 0.0
    %1221 = vadd.xlane.f32.xlu0 %v1220
    %v1222 = vpop.xlane.xlu0 %1221
    %v1223 = vrcp.pop %v1222
    %v1224 = vmul.f32 %v1219, %v1223
    %1225 = vrot.lane.b32.xlu0 %v160, 64
    %v1226 = vpop.permute.xlu0 %1225
    %v1229 = vsel %vm177, %v1224, 0
    %1231 = vmatprep.subr.mxu0 0.0
    %1232 = vmatpush1.msra.mxu0 %v1226
    %1233 = vmatprep.subr.mxu0 0.0
    %1234 = vmatpush1.msra.mxu0 0.0
    %1235 = vmatprep.subr.mxu0 0.0
    %1236 = vmatpush1.msra.mxu0 0.0
    %1237 = vmatprep.subr.mxu0 0.0
    %1238 = vmatpush1.msra.mxu0 0.0
    %1239 = vmatprep.subr.mxu0 0.0
    %1240 = vmatpush1.msra.mxu0 0.0
    %1241 = vmatprep.subr.mxu0 0.0
    %1242 = vmatpush1.msra.mxu0 0.0
    %1243 = vmatprep.subr.mxu0 0.0
    %1244 = vmatpush1.msra.mxu0 0.0
    %1245 = vmatprep.subr.mxu0 0.0
    %1246 = vmatpush1.msra.mxu0 0.0
    %1247 = vmatprep.subr.mxu0 0.0
    %1248 = vmatpush1.msra.mxu0 0.0
    %1249 = vmatprep.subr.mxu0 0.0
    %1250 = vmatpush1.msra.mxu0 0.0
    %1251 = vmatprep.subr.mxu0 0.0
    %1252 = vmatpush1.msra.mxu0 0.0
    %1253 = vmatprep.subr.mxu0 0.0
    %1254 = vmatpush1.msra.mxu0 0.0
    %1255 = vmatprep.subr.mxu0 0.0
    %1256 = vmatpush1.msra.mxu0 0.0
    %1257 = vmatprep.subr.mxu0 0.0
    %1258 = vmatpush1.msra.mxu0 0.0
    %1259 = vmatprep.subr.mxu0 0.0
    %1260 = vmatpush1.msra.mxu0 0.0
    %1261 = vmatprep.subr.mxu0 0.0
    %1262 = vmatpush1.msra.mxu0 0.0
    %1263 = vmatprep.subr.mxu0 0.0
    %1264 = vmatpush1.msra.mxu0 0.0
    %1265 = vmatprep.subr.mxu0 0.0
    %1266 = vmatpush1.msra.mxu0 0.0
    %1267 = vmatprep.subr.mxu0 0.0
    %1268 = vmatpush1.msra.mxu0 0.0
    %1269 = vmatprep.subr.mxu0 0.0
    %1270 = vmatpush1.msra.mxu0 0.0
    %1271 = vmatprep.subr.mxu0 0.0
    %1272 = vmatpush1.msra.mxu0 0.0
    %1273 = vmatprep.subr.mxu0 0.0
    %1274 = vmatpush1.msra.mxu0 0.0
    %1275 = vmatprep.subr.mxu0 0.0
    %1276 = vmatpush1.msra.mxu0 0.0
    %1277 = vmatprep.subr.mxu0 0.0
    %1278 = vmatpush1.msra.mxu0 0.0
    %1279 = vmatprep.subr.mxu0 0.0
    %1280 = vmatpush1.msra.mxu0 0.0
    %1281 = vmatprep.subr.mxu0 0.0
    %1282 = vmatpush1.msra.mxu0 0.0
    %1283 = vmatprep.subr.mxu0 0.0
    %1284 = vmatpush1.msra.mxu0 0.0
    %1285 = vmatprep.subr.mxu0 0.0
    %1286 = vmatpush1.msra.mxu0 0.0
    %1287 = vmatprep.subr.mxu0 0.0
    %1288 = vmatpush1.msra.mxu0 0.0
    %1289 = vmatprep.subr.mxu0 0.0
    %1290 = vmatpush1.msra.mxu0 0.0
    %1291 = vmatprep.subr.mxu0 0.0
    %1292 = vmatpush1.msra.mxu0 0.0
    %1293 = vmatprep.subr.mxu0 0.0
    %1294 = vmatpush1.msra.mxu0 0.0
    %1295 = vmatprep.mubr.f32.mxu0 0.0
    %1296 = vmatmul.mubr.f32.gmra.mrb[0].mxu0 %v1229
    %v1297 = vpop.f32.mrb[0].mxu0
    %v1298 = vadd.f32 0.0, %v1297
    %v1299 = vpop.f32.mrb[0].mxu0
    %1300 = vdwg.mxu0
    %1301 = vrot.lane.b32.xlu0 %v1135, 120
    %v1302 = vpop.permute.xlu0 %1301
    %1303 = vrot.lane.b32.xlu0 %v160, 88
    %v1304 = vpop.permute.xlu0 %1303
    %v1305 = vsel %vm177, %v1302, 0
    %v1307 = vsel %vm177, %v1304, 0
    %1309 = vmatprep.subr.mxu0 0.0
    %1310 = vmatpush1.xpose.msra.mxu0 %v1307
    %1311 = vmatprep.subr.mxu0 0.0
    %1312 = vmatpush1.xpose.msra.mxu0 0.0
    %1313 = vmatprep.subr.mxu0 0.0
    %1314 = vmatpush1.xpose.msra.mxu0 0.0
    %1315 = vmatprep.subr.mxu0 0.0
    %1316 = vmatpush1.xpose.msra.mxu0 0.0
    %1317 = vmatprep.subr.mxu0 0.0
    %1318 = vmatpush1.xpose.msra.mxu0 0.0
    %1319 = vmatprep.subr.mxu0 0.0
    %1320 = vmatpush1.xpose.msra.mxu0 0.0
    %1321 = vmatprep.subr.mxu0 0.0
    %1322 = vmatpush1.xpose.msra.mxu0 0.0
    %1323 = vmatprep.subr.mxu0 0.0
    %1324 = vmatpush1.xpose.msra.mxu0 0.0
    %1325 = vmatprep.subr.mxu0 0.0
    %1326 = vmatpush1.xpose.msra.mxu0 0.0
    %1327 = vmatprep.subr.mxu0 0.0
    %1328 = vmatpush1.xpose.msra.mxu0 0.0
    %1329 = vmatprep.subr.mxu0 0.0
    %1330 = vmatpush1.xpose.msra.mxu0 0.0
    %1331 = vmatprep.subr.mxu0 0.0
    %1332 = vmatpush1.xpose.msra.mxu0 0.0
    %1333 = vmatprep.subr.mxu0 0.0
    %1334 = vmatpush1.xpose.msra.mxu0 0.0
    %1335 = vmatprep.subr.mxu0 0.0
    %1336 = vmatpush1.xpose.msra.mxu0 0.0
    %1337 = vmatprep.subr.mxu0 0.0
    %1338 = vmatpush1.xpose.msra.mxu0 0.0
    %1339 = vmatprep.subr.mxu0 0.0
    %1340 = vmatpush1.xpose.msra.mxu0 0.0
    %1341 = vmatprep.subr.mxu0 0.0
    %1342 = vmatpush1.xpose.msra.mxu0 0.0
    %1343 = vmatprep.subr.mxu0 0.0
    %1344 = vmatpush1.xpose.msra.mxu0 0.0
    %1345 = vmatprep.subr.mxu0 0.0
    %1346 = vmatpush1.xpose.msra.mxu0 0.0
    %1347 = vmatprep.subr.mxu0 0.0
    %1348 = vmatpush1.xpose.msra.mxu0 0.0
    %1349 = vmatprep.subr.mxu0 0.0
    %1350 = vmatpush1.xpose.msra.mxu0 0.0
    %1351 = vmatprep.subr.mxu0 0.0
    %1352 = vmatpush1.xpose.msra.mxu0 0.0
    %1353 = vmatprep.subr.mxu0 0.0
    %1354 = vmatpush1.xpose.msra.mxu0 0.0
    %1355 = vmatprep.subr.mxu0 0.0
    %1356 = vmatpush1.xpose.msra.mxu0 0.0
    %1357 = vmatprep.subr.mxu0 0.0
    %1358 = vmatpush1.xpose.msra.mxu0 0.0
    %1359 = vmatprep.subr.mxu0 0.0
    %1360 = vmatpush1.xpose.msra.mxu0 0.0
    %1361 = vmatprep.subr.mxu0 0.0
    %1362 = vmatpush1.xpose.msra.mxu0 0.0
    %1363 = vmatprep.subr.mxu0 0.0
    %1364 = vmatpush1.xpose.msra.mxu0 0.0
    %1365 = vmatprep.subr.mxu0 0.0
    %1366 = vmatpush1.xpose.msra.mxu0 0.0
    %1367 = vmatprep.subr.mxu0 0.0
    %1368 = vmatpush1.xpose.msra.mxu0 0.0
    %1369 = vmatprep.subr.mxu0 0.0
    %1370 = vmatpush1.xpose.msra.mxu0 0.0
    %1371 = vmatprep.subr.mxu0 0.0
    %1372 = vmatpush1.xpose.msra.mxu0 0.0
    %1373 = vmatprep.mubr.f32.mxu0 0.0
    %1374 = vmatmul.mubr.f32.gmra.mrb[0].mxu0 %v1305
    %v1375 = vpop.f32.mrb[0].mxu0
    %v1376 = vadd.f32 %v168, %v1375
    %v1377 = vpop.f32.mrb[0].mxu0
    %1378 = vdwg.mxu0
    %v1379 = vsel %vm177, %v1376, -inf
    %1380 = vmax.xlane.f32.xlu0 %v1379
    %v1381 = vpop.xlane.xlu0 %1380
    %v1382 = vsub.f32 %v1376, %v1381
    %v1383 = vmul.f32 %v1382, 1.442695
    %v1384 = vpow.pop %v1383
    %v1385 = vsel %vm177, %v1384, 0.0
    %1386 = vadd.xlane.f32.xlu0 %v1385
    %v1387 = vpop.xlane.xlu0 %1386
    %v1388 = vrcp.pop %v1387
    %v1389 = vmul.f32 %v1384, %v1388
    %1390 = vrot.lane.b32.xlu0 %v160, 56
    %v1391 = vpop.permute.xlu0 %1390
    %v1394 = vsel %vm177, %v1389, 0
    %1396 = vmatprep.subr.mxu0 0.0
    %1397 = vmatpush1.msra.mxu0 %v1391
    %1398 = vmatprep.subr.mxu0 0.0
    %1399 = vmatpush1.msra.mxu0 0.0
    %1400 = vmatprep.subr.mxu0 0.0
    %1401 = vmatpush1.msra.mxu0 0.0
    %1402 = vmatprep.subr.mxu0 0.0
    %1403 = vmatpush1.msra.mxu0 0.0
    %1404 = vmatprep.subr.mxu0 0.0
    %1405 = vmatpush1.msra.mxu0 0.0
    %1406 = vmatprep.subr.mxu0 0.0
    %1407 = vmatpush1.msra.mxu0 0.0
    %1408 = vmatprep.subr.mxu0 0.0
    %1409 = vmatpush1.msra.mxu0 0.0
    %1410 = vmatprep.subr.mxu0 0.0
    %1411 = vmatpush1.msra.mxu0 0.0
    %1412 = vmatprep.subr.mxu0 0.0
    %1413 = vmatpush1.msra.mxu0 0.0
    %1414 = vmatprep.subr.mxu0 0.0
    %1415 = vmatpush1.msra.mxu0 0.0
    %1416 = vmatprep.subr.mxu0 0.0
    %1417 = vmatpush1.msra.mxu0 0.0
    %1418 = vmatprep.subr.mxu0 0.0
    %1419 = vmatpush1.msra.mxu0 0.0
    %1420 = vmatprep.subr.mxu0 0.0
    %1421 = vmatpush1.msra.mxu0 0.0
    %1422 = vmatprep.subr.mxu0 0.0
    %1423 = vmatpush1.msra.mxu0 0.0
    %1424 = vmatprep.subr.mxu0 0.0
    %1425 = vmatpush1.msra.mxu0 0.0
    %1426 = vmatprep.subr.mxu0 0.0
    %1427 = vmatpush1.msra.mxu0 0.0
    %1428 = vmatprep.subr.mxu0 0.0
    %1429 = vmatpush1.msra.mxu0 0.0
    %1430 = vmatprep.subr.mxu0 0.0
    %1431 = vmatpush1.msra.mxu0 0.0
    %1432 = vmatprep.subr.mxu0 0.0
    %1433 = vmatpush1.msra.mxu0 0.0
    %1434 = vmatprep.subr.mxu0 0.0
    %1435 = vmatpush1.msra.mxu0 0.0
    %1436 = vmatprep.subr.mxu0 0.0
    %1437 = vmatpush1.msra.mxu0 0.0
    %1438 = vmatprep.subr.mxu0 0.0
    %1439 = vmatpush1.msra.mxu0 0.0
    %1440 = vmatprep.subr.mxu0 0.0
    %1441 = vmatpush1.msra.mxu0 0.0
    %1442 = vmatprep.subr.mxu0 0.0
    %1443 = vmatpush1.msra.mxu0 0.0
    %1444 = vmatprep.subr.mxu0 0.0
    %1445 = vmatpush1.msra.mxu0 0.0
    %1446 = vmatprep.subr.mxu0 0.0
    %1447 = vmatpush1.msra.mxu0 0.0
    %1448 = vmatprep.subr.mxu0 0.0
    %1449 = vmatpush1.msra.mxu0 0.0
    %1450 = vmatprep.subr.mxu0 0.0
    %1451 = vmatpush1.msra.mxu0 0.0
    %1452 = vmatprep.subr.mxu0 0.0
    %1453 = vmatpush1.msra.mxu0 0.0
    %1454 = vmatprep.subr.mxu0 0.0
    %1455 = vmatpush1.msra.mxu0 0.0
    %1456 = vmatprep.subr.mxu0 0.0
    %1457 = vmatpush1.msra.mxu0 0.0
    %1458 = vmatprep.subr.mxu0 0.0
    %1459 = vmatpush1.msra.mxu0 0.0
    %1460 = vmatprep.mubr.f32.mxu0 0.0
    %1461 = vmatmul.mubr.f32.gmra.mrb[0].mxu0 %v1394
    %v1462 = vpop.f32.mrb[0].mxu0
    %v1463 = vadd.f32 0.0, %v1462
    %v1464 = vpop.f32.mrb[0].mxu0
    %1465 = vdwg.mxu0
    %v1467 = vsel %vm177, %v1463, 0
    %1469 = vmatprep.subr.mxu0 0.0
    %1470 = vmatpush1.msra.mxu0 %v170
    %1471 = vmatprep.subr.mxu0 0.0
    %1472 = vmatpush1.msra.mxu0 0.0
    %1473 = vmatprep.subr.mxu0 0.0
    %1474 = vmatpush1.msra.mxu0 0.0
    %1475 = vmatprep.subr.mxu0 0.0
    %1476 = vmatpush1.msra.mxu0 0.0
    %1477 = vmatprep.subr.mxu0 0.0
    %1478 = vmatpush1.msra.mxu0 0.0
    %1479 = vmatprep.subr.mxu0 0.0
    %1480 = vmatpush1.msra.mxu0 0.0
    %1481 = vmatprep.subr.mxu0 0.0
    %1482 = vmatpush1.msra.mxu0 0.0
    %1483 = vmatprep.subr.mxu0 0.0
    %1484 = vmatpush1.msra.mxu0 0.0
    %1485 = vmatprep.subr.mxu0 0.0
    %1486 = vmatpush1.msra.mxu0 0.0
    %1487 = vmatprep.subr.mxu0 0.0
    %1488 = vmatpush1.msra.mxu0 0.0
    %1489 = vmatprep.subr.mxu0 0.0
    %1490 = vmatpush1.msra.mxu0 0.0
    %1491 = vmatprep.subr.mxu0 0.0
    %1492 = vmatpush1.msra.mxu0 0.0
    %1493 = vmatprep.subr.mxu0 0.0
    %1494 = vmatpush1.msra.mxu0 0.0
    %1495 = vmatprep.subr.mxu0 0.0
    %1496 = vmatpush1.msra.mxu0 0.0
    %1497 = vmatprep.subr.mxu0 0.0
    %1498 = vmatpush1.msra.mxu0 0.0
    %1499 = vmatprep.subr.mxu0 0.0
    %1500 = vmatpush1.msra.mxu0 0.0
    %1501 = vmatprep.subr.mxu0 0.0
    %1502 = vmatpush1.msra.mxu0 0.0
    %1503 = vmatprep.subr.mxu0 0.0
    %1504 = vmatpush1.msra.mxu0 0.0
    %1505 = vmatprep.subr.mxu0 0.0
    %1506 = vmatpush1.msra.mxu0 0.0
    %1507 = vmatprep.subr.mxu0 0.0
    %1508 = vmatpush1.msra.mxu0 0.0
    %1509 = vmatprep.subr.mxu0 0.0
    %1510 = vmatpush1.msra.mxu0 0.0
    %1511 = vmatprep.subr.mxu0 0.0
    %1512 = vmatpush1.msra.mxu0 0.0
    %1513 = vmatprep.subr.mxu0 0.0
    %1514 = vmatpush1.msra.mxu0 0.0
    %1515 = vmatprep.subr.mxu0 0.0
    %1516 = vmatpush1.msra.mxu0 0.0
    %1517 = vmatprep.subr.mxu0 0.0
    %1518 = vmatpush1.msra.mxu0 0.0
    %1519 = vmatprep.subr.mxu0 0.0
    %1520 = vmatpush1.msra.mxu0 0.0
    %1521 = vmatprep.subr.mxu0 0.0
    %1522 = vmatpush1.msra.mxu0 0.0
    %1523 = vmatprep.subr.mxu0 0.0
    %1524 = vmatpush1.msra.mxu0 0.0
    %1525 = vmatprep.subr.mxu0 0.0
    %1526 = vmatpush1.msra.mxu0 0.0
    %1527 = vmatprep.subr.mxu0 0.0
    %1528 = vmatpush1.msra.mxu0 0.0
    %1529 = vmatprep.subr.mxu0 0.0
    %1530 = vmatpush1.msra.mxu0 0.0
    %1531 = vmatprep.subr.mxu0 0.0
    %1532 = vmatpush1.msra.mxu0 0.0
    %1533 = vmatprep.mubr.f32.mxu0 0.0
    %1534 = vmatmul.mubr.f32.gmra.mrb[0].mxu0 %v1467
    %v1535 = vpop.f32.mrb[0].mxu0
    %v1536 = vadd.f32 0.0, %v1535
    %v1537 = vpop.f32.mrb[0].mxu0
    %1538 = vdwg.mxu0
    %v1540 = vsel %vm177, %v1298, 0
    %1542 = vmatprep.subr.mxu0 0.0
    %1543 = vmatpush1.msra.mxu0 %v169
    %1544 = vmatprep.subr.mxu0 0.0
    %1545 = vmatpush1.msra.mxu0 0.0
    %1546 = vmatprep.subr.mxu0 0.0
    %1547 = vmatpush1.msra.mxu0 0.0
    %1548 = vmatprep.subr.mxu0 0.0
    %1549 = vmatpush1.msra.mxu0 0.0
    %1550 = vmatprep.subr.mxu0 0.0
    %1551 = vmatpush1.msra.mxu0 0.0
    %1552 = vmatprep.subr.mxu0 0.0
    %1553 = vmatpush1.msra.mxu0 0.0
    %1554 = vmatprep.subr.mxu0 0.0
    %1555 = vmatpush1.msra.mxu0 0.0
    %1556 = vmatprep.subr.mxu0 0.0
    %1557 = vmatpush1.msra.mxu0 0.0
    %1558 = vmatprep.subr.mxu0 0.0
    %1559 = vmatpush1.msra.mxu0 0.0
    %1560 = vmatprep.subr.mxu0 0.0
    %1561 = vmatpush1.msra.mxu0 0.0
    %1562 = vmatprep.subr.mxu0 0.0
    %1563 = vmatpush1.msra.mxu0 0.0
    %1564 = vmatprep.subr.mxu0 0.0
    %1565 = vmatpush1.msra.mxu0 0.0
    %1566 = vmatprep.subr.mxu0 0.0
    %1567 = vmatpush1.msra.mxu0 0.0
    %1568 = vmatprep.subr.mxu0 0.0
    %1569 = vmatpush1.msra.mxu0 0.0
    %1570 = vmatprep.subr.mxu0 0.0
    %1571 = vmatpush1.msra.mxu0 0.0
    %1572 = vmatprep.subr.mxu0 0.0
    %1573 = vmatpush1.msra.mxu0 0.0
    %1574 = vmatprep.subr.mxu0 0.0
    %1575 = vmatpush1.msra.mxu0 0.0
    %1576 = vmatprep.subr.mxu0 0.0
    %1577 = vmatpush1.msra.mxu0 0.0
    %1578 = vmatprep.subr.mxu0 0.0
    %1579 = vmatpush1.msra.mxu0 0.0
    %1580 = vmatprep.subr.mxu0 0.0
    %1581 = vmatpush1.msra.mxu0 0.0
    %1582 = vmatprep.subr.mxu0 0.0
    %1583 = vmatpush1.msra.mxu0 0.0
    %1584 = vmatprep.subr.mxu0 0.0
    %1585 = vmatpush1.msra.mxu0 0.0
    %1586 = vmatprep.subr.mxu0 0.0
    %1587 = vmatpush1.msra.mxu0 0.0
    %1588 = vmatprep.subr.mxu0 0.0
    %1589 = vmatpush1.msra.mxu0 0.0
    %1590 = vmatprep.subr.mxu0 0.0
    %1591 = vmatpush1.msra.mxu0 0.0
    %1592 = vmatprep.subr.mxu0 0.0
    %1593 = vmatpush1.msra.mxu0 0.0
    %1594 = vmatprep.subr.mxu0 0.0
    %1595 = vmatpush1.msra.mxu0 0.0
    %1596 = vmatprep.subr.mxu0 0.0
    %1597 = vmatpush1.msra.mxu0 0.0
    %1598 = vmatprep.subr.mxu0 0.0
    %1599 = vmatpush1.msra.mxu0 0.0
    %1600 = vmatprep.subr.mxu0 0.0
    %1601 = vmatpush1.msra.mxu0 0.0
    %1602 = vmatprep.subr.mxu0 0.0
    %1603 = vmatpush1.msra.mxu0 0.0
    %1604 = vmatprep.subr.mxu0 0.0
    %1605 = vmatpush1.msra.mxu0 0.0
    %1606 = vmatprep.mubr.f32.mxu0 0.0
    %1607 = vmatmul.mubr.f32.gmra.mrb[0].mxu0 %v1540
    %v1608 = vpop.f32.mrb[0].mxu0
    %v1609 = vadd.f32 %v1536, %v1608
    %v1610 = vpop.f32.mrb[0].mxu0
    %1611 = vdwg.mxu0
    %1612 = vrot.lane.b32.xlu0 %v1135, 112
    %v1613 = vpop.permute.xlu0 %1612
    %1614 = vrot.lane.b32.xlu0 %v160, 80
    %v1615 = vpop.permute.xlu0 %1614
    %v1616 = vsel %vm177, %v1613, 0
    %v1618 = vsel %vm177, %v1615, 0
    %1620 = vmatprep.subr.mxu0 0.0
    %1621 = vmatpush1.xpose.msra.mxu0 %v1618
    %1622 = vmatprep.subr.mxu0 0.0
    %1623 = vmatpush1.xpose.msra.mxu0 0.0
    %1624 = vmatprep.subr.mxu0 0.0
    %1625 = vmatpush1.xpose.msra.mxu0 0.0
    %1626 = vmatprep.subr.mxu0 0.0
    %1627 = vmatpush1.xpose.msra.mxu0 0.0
    %1628 = vmatprep.subr.mxu0 0.0
    %1629 = vmatpush1.xpose.msra.mxu0 0.0
    %1630 = vmatprep.subr.mxu0 0.0
    %1631 = vmatpush1.xpose.msra.mxu0 0.0
    %1632 = vmatprep.subr.mxu0 0.0
    %1633 = vmatpush1.xpose.msra.mxu0 0.0
    %1634 = vmatprep.subr.mxu0 0.0
    %1635 = vmatpush1.xpose.msra.mxu0 0.0
    %1636 = vmatprep.subr.mxu0 0.0
    %1637 = vmatpush1.xpose.msra.mxu0 0.0
    %1638 = vmatprep.subr.mxu0 0.0
    %1639 = vmatpush1.xpose.msra.mxu0 0.0
    %1640 = vmatprep.subr.mxu0 0.0
    %1641 = vmatpush1.xpose.msra.mxu0 0.0
    %1642 = vmatprep.subr.mxu0 0.0
    %1643 = vmatpush1.xpose.msra.mxu0 0.0
    %1644 = vmatprep.subr.mxu0 0.0
    %1645 = vmatpush1.xpose.msra.mxu0 0.0
    %1646 = vmatprep.subr.mxu0 0.0
    %1647 = vmatpush1.xpose.msra.mxu0 0.0
    %1648 = vmatprep.subr.mxu0 0.0
    %1649 = vmatpush1.xpose.msra.mxu0 0.0
    %1650 = vmatprep.subr.mxu0 0.0
    %1651 = vmatpush1.xpose.msra.mxu0 0.0
    %1652 = vmatprep.subr.mxu0 0.0
    %1653 = vmatpush1.xpose.msra.mxu0 0.0
    %1654 = vmatprep.subr.mxu0 0.0
    %1655 = vmatpush1.xpose.msra.mxu0 0.0
    %1656 = vmatprep.subr.mxu0 0.0
    %1657 = vmatpush1.xpose.msra.mxu0 0.0
    %1658 = vmatprep.subr.mxu0 0.0
    %1659 = vmatpush1.xpose.msra.mxu0 0.0
    %1660 = vmatprep.subr.mxu0 0.0
    %1661 = vmatpush1.xpose.msra.mxu0 0.0
    %1662 = vmatprep.subr.mxu0 0.0
    %1663 = vmatpush1.xpose.msra.mxu0 0.0
    %1664 = vmatprep.subr.mxu0 0.0
    %1665 = vmatpush1.xpose.msra.mxu0 0.0
    %1666 = vmatprep.subr.mxu0 0.0
    %1667 = vmatpush1.xpose.msra.mxu0 0.0
    %1668 = vmatprep.subr.mxu0 0.0
    %1669 = vmatpush1.xpose.msra.mxu0 0.0
    %1670 = vmatprep.subr.mxu0 0.0
    %1671 = vmatpush1.xpose.msra.mxu0 0.0
    %1672 = vmatprep.subr.mxu0 0.0
    %1673 = vmatpush1.xpose.msra.mxu0 0.0
    %1674 = vmatprep.subr.mxu0 0.0
    %1675 = vmatpush1.xpose.msra.mxu0 0.0
    %1676 = vmatprep.subr.mxu0 0.0
    %1677 = vmatpush1.xpose.msra.mxu0 0.0
    %1678 = vmatprep.subr.mxu0 0.0
    %1679 = vmatpush1.xpose.msra.mxu0 0.0
    %1680 = vmatprep.subr.mxu0 0.0
    %1681 = vmatpush1.xpose.msra.mxu0 0.0
    %1682 = vmatprep.subr.mxu0 0.0
    %1683 = vmatpush1.xpose.msra.mxu0 0.0
    %1684 = vmatprep.mubr.f32.mxu0 0.0
    %1685 = vmatmul.mubr.f32.gmra.mrb[0].mxu0 %v1616
    %v1686 = vpop.f32.mrb[0].mxu0
    %v1687 = vadd.f32 %v168, %v1686
    %v1688 = vpop.f32.mrb[0].mxu0
    %1689 = vdwg.mxu0
    %v1690 = vsel %vm177, %v1687, -inf
    %1691 = vmax.xlane.f32.xlu0 %v1690
    %v1692 = vpop.xlane.xlu0 %1691
    %v1693 = vsub.f32 %v1687, %v1692
    %v1694 = vmul.f32 %v1693, 1.442695
    %v1695 = vpow.pop %v1694
    %v1696 = vsel %vm177, %v1695, 0.0
    %1697 = vadd.xlane.f32.xlu0 %v1696
    %v1698 = vpop.xlane.xlu0 %1697
    %v1699 = vrcp.pop %v1698
    %v1700 = vmul.f32 %v1695, %v1699
    %1701 = vrot.lane.b32.xlu0 %v160, 48
    %v1702 = vpop.permute.xlu0 %1701
    %v1705 = vsel %vm177, %v1700, 0
    %1707 = vmatprep.subr.mxu0 0.0
    %1708 = vmatpush1.msra.mxu0 %v1702
    %1709 = vmatprep.subr.mxu0 0.0
    %1710 = vmatpush1.msra.mxu0 0.0
    %1711 = vmatprep.subr.mxu0 0.0
    %1712 = vmatpush1.msra.mxu0 0.0
    %1713 = vmatprep.subr.mxu0 0.0
    %1714 = vmatpush1.msra.mxu0 0.0
    %1715 = vmatprep.subr.mxu0 0.0
    %1716 = vmatpush1.msra.mxu0 0.0
    %1717 = vmatprep.subr.mxu0 0.0
    %1718 = vmatpush1.msra.mxu0 0.0
    %1719 = vmatprep.subr.mxu0 0.0
    %1720 = vmatpush1.msra.mxu0 0.0
    %1721 = vmatprep.subr.mxu0 0.0
    %1722 = vmatpush1.msra.mxu0 0.0
    %1723 = vmatprep.subr.mxu0 0.0
    %1724 = vmatpush1.msra.mxu0 0.0
    %1725 = vmatprep.subr.mxu0 0.0
    %1726 = vmatpush1.msra.mxu0 0.0
    %1727 = vmatprep.subr.mxu0 0.0
    %1728 = vmatpush1.msra.mxu0 0.0
    %1729 = vmatprep.subr.mxu0 0.0
    %1730 = vmatpush1.msra.mxu0 0.0
    %1731 = vmatprep.subr.mxu0 0.0
    %1732 = vmatpush1.msra.mxu0 0.0
    %1733 = vmatprep.subr.mxu0 0.0
    %1734 = vmatpush1.msra.mxu0 0.0
    %1735 = vmatprep.subr.mxu0 0.0
    %1736 = vmatpush1.msra.mxu0 0.0
    %1737 = vmatprep.subr.mxu0 0.0
    %1738 = vmatpush1.msra.mxu0 0.0
    %1739 = vmatprep.subr.mxu0 0.0
    %1740 = vmatpush1.msra.mxu0 0.0
    %1741 = vmatprep.subr.mxu0 0.0
    %1742 = vmatpush1.msra.mxu0 0.0
    %1743 = vmatprep.subr.mxu0 0.0
    %1744 = vmatpush1.msra.mxu0 0.0
    %1745 = vmatprep.subr.mxu0 0.0
    %1746 = vmatpush1.msra.mxu0 0.0
    %1747 = vmatprep.subr.mxu0 0.0
    %1748 = vmatpush1.msra.mxu0 0.0
    %1749 = vmatprep.subr.mxu0 0.0
    %1750 = vmatpush1.msra.mxu0 0.0
    %1751 = vmatprep.subr.mxu0 0.0
    %1752 = vmatpush1.msra.mxu0 0.0
    %1753 = vmatprep.subr.mxu0 0.0
    %1754 = vmatpush1.msra.mxu0 0.0
    %1755 = vmatprep.subr.mxu0 0.0
    %1756 = vmatpush1.msra.mxu0 0.0
    %1757 = vmatprep.subr.mxu0 0.0
    %1758 = vmatpush1.msra.mxu0 0.0
    %1759 = vmatprep.subr.mxu0 0.0
    %1760 = vmatpush1.msra.mxu0 0.0
    %1761 = vmatprep.subr.mxu0 0.0
    %1762 = vmatpush1.msra.mxu0 0.0
    %1763 = vmatprep.subr.mxu0 0.0
    %1764 = vmatpush1.msra.mxu0 0.0
    %1765 = vmatprep.subr.mxu0 0.0
    %1766 = vmatpush1.msra.mxu0 0.0
    %1767 = vmatprep.subr.mxu0 0.0
    %1768 = vmatpush1.msra.mxu0 0.0
    %1769 = vmatprep.subr.mxu0 0.0
    %1770 = vmatpush1.msra.mxu0 0.0
    %1771 = vmatprep.mubr.f32.mxu0 0.0
    %1772 = vmatmul.mubr.f32.gmra.mrb[0].mxu0 %v1705
    %v1773 = vpop.f32.mrb[0].mxu0
    %v1774 = vadd.f32 0.0, %v1773
    %v1775 = vpop.f32.mrb[0].mxu0
    %1776 = vdwg.mxu0
    %v1778 = vsel %vm177, %v1774, 0
    %1780 = vmatprep.subr.mxu0 0.0
    %1781 = vmatpush1.msra.mxu0 %v171
    %1782 = vmatprep.subr.mxu0 0.0
    %1783 = vmatpush1.msra.mxu0 0.0
    %1784 = vmatprep.subr.mxu0 0.0
    %1785 = vmatpush1.msra.mxu0 0.0
    %1786 = vmatprep.subr.mxu0 0.0
    %1787 = vmatpush1.msra.mxu0 0.0
    %1788 = vmatprep.subr.mxu0 0.0
    %1789 = vmatpush1.msra.mxu0 0.0
    %1790 = vmatprep.subr.mxu0 0.0
    %1791 = vmatpush1.msra.mxu0 0.0
    %1792 = vmatprep.subr.mxu0 0.0
    %1793 = vmatpush1.msra.mxu0 0.0
    %1794 = vmatprep.subr.mxu0 0.0
    %1795 = vmatpush1.msra.mxu0 0.0
    %1796 = vmatprep.subr.mxu0 0.0
    %1797 = vmatpush1.msra.mxu0 0.0
    %1798 = vmatprep.subr.mxu0 0.0
    %1799 = vmatpush1.msra.mxu0 0.0
    %1800 = vmatprep.subr.mxu0 0.0
    %1801 = vmatpush1.msra.mxu0 0.0
    %1802 = vmatprep.subr.mxu0 0.0
    %1803 = vmatpush1.msra.mxu0 0.0
    %1804 = vmatprep.subr.mxu0 0.0
    %1805 = vmatpush1.msra.mxu0 0.0
    %1806 = vmatprep.subr.mxu0 0.0
    %1807 = vmatpush1.msra.mxu0 0.0
    %1808 = vmatprep.subr.mxu0 0.0
    %1809 = vmatpush1.msra.mxu0 0.0
    %1810 = vmatprep.subr.mxu0 0.0
    %1811 = vmatpush1.msra.mxu0 0.0
    %1812 = vmatprep.subr.mxu0 0.0
    %1813 = vmatpush1.msra.mxu0 0.0
    %1814 = vmatprep.subr.mxu0 0.0
    %1815 = vmatpush1.msra.mxu0 0.0
    %1816 = vmatprep.subr.mxu0 0.0
    %1817 = vmatpush1.msra.mxu0 0.0
    %1818 = vmatprep.subr.mxu0 0.0
    %1819 = vmatpush1.msra.mxu0 0.0
    %1820 = vmatprep.subr.mxu0 0.0
    %1821 = vmatpush1.msra.mxu0 0.0
    %1822 = vmatprep.subr.mxu0 0.0
    %1823 = vmatpush1.msra.mxu0 0.0
    %1824 = vmatprep.subr.mxu0 0.0
    %1825 = vmatpush1.msra.mxu0 0.0
    %1826 = vmatprep.subr.mxu0 0.0
    %1827 = vmatpush1.msra.mxu0 0.0
    %1828 = vmatprep.subr.mxu0 0.0
    %1829 = vmatpush1.msra.mxu0 0.0
    %1830 = vmatprep.subr.mxu0 0.0
    %1831 = vmatpush1.msra.mxu0 0.0
    %1832 = vmatprep.subr.mxu0 0.0
    %1833 = vmatpush1.msra.mxu0 0.0
    %1834 = vmatprep.subr.mxu0 0.0
    %1835 = vmatpush1.msra.mxu0 0.0
    %1836 = vmatprep.subr.mxu0 0.0
    %1837 = vmatpush1.msra.mxu0 0.0
    %1838 = vmatprep.subr.mxu0 0.0
    %1839 = vmatpush1.msra.mxu0 0.0
    %1840 = vmatprep.subr.mxu0 0.0
    %1841 = vmatpush1.msra.mxu0 0.0
    %1842 = vmatprep.subr.mxu0 0.0
    %1843 = vmatpush1.msra.mxu0 0.0
    %1844 = vmatprep.mubr.f32.mxu0 0.0
    %1845 = vmatmul.mubr.f32.gmra.mrb[0].mxu0 %v1778
    %v1846 = vpop.f32.mrb[0].mxu0
    %v1847 = vadd.f32 0.0, %v1846
    %v1848 = vpop.f32.mrb[0].mxu0
    %1849 = vdwg.mxu0
    %v1850 = vadd.f32 %v1609, %v1847
    %1851 = vrot.lane.b32.xlu0 %v1135, 104
    %v1852 = vpop.permute.xlu0 %1851
    %1853 = vrot.lane.b32.xlu0 %v160, 72
    %v1854 = vpop.permute.xlu0 %1853
    %v1855 = vsel %vm177, %v1852, 0
    %v1857 = vsel %vm177, %v1854, 0
    %1859 = vmatprep.subr.mxu0 0.0
    %1860 = vmatpush1.xpose.msra.mxu0 %v1857
    %1861 = vmatprep.subr.mxu0 0.0
    %1862 = vmatpush1.xpose.msra.mxu0 0.0
    %1863 = vmatprep.subr.mxu0 0.0
    %1864 = vmatpush1.xpose.msra.mxu0 0.0
    %1865 = vmatprep.subr.mxu0 0.0
    %1866 = vmatpush1.xpose.msra.mxu0 0.0
    %1867 = vmatprep.subr.mxu0 0.0
    %1868 = vmatpush1.xpose.msra.mxu0 0.0
    %1869 = vmatprep.subr.mxu0 0.0
    %1870 = vmatpush1.xpose.msra.mxu0 0.0
    %1871 = vmatprep.subr.mxu0 0.0
    %1872 = vmatpush1.xpose.msra.mxu0 0.0
    %1873 = vmatprep.subr.mxu0 0.0
    %1874 = vmatpush1.xpose.msra.mxu0 0.0
    %1875 = vmatprep.subr.mxu0 0.0
    %1876 = vmatpush1.xpose.msra.mxu0 0.0
    %1877 = vmatprep.subr.mxu0 0.0
    %1878 = vmatpush1.xpose.msra.mxu0 0.0
    %1879 = vmatprep.subr.mxu0 0.0
    %1880 = vmatpush1.xpose.msra.mxu0 0.0
    %1881 = vmatprep.subr.mxu0 0.0
    %1882 = vmatpush1.xpose.msra.mxu0 0.0
    %1883 = vmatprep.subr.mxu0 0.0
    %1884 = vmatpush1.xpose.msra.mxu0 0.0
    %1885 = vmatprep.subr.mxu0 0.0
    %1886 = vmatpush1.xpose.msra.mxu0 0.0
    %1887 = vmatprep.subr.mxu0 0.0
    %1888 = vmatpush1.xpose.msra.mxu0 0.0
    %1889 = vmatprep.subr.mxu0 0.0
    %1890 = vmatpush1.xpose.msra.mxu0 0.0
    %1891 = vmatprep.subr.mxu0 0.0
    %1892 = vmatpush1.xpose.msra.mxu0 0.0
    %1893 = vmatprep.subr.mxu0 0.0
    %1894 = vmatpush1.xpose.msra.mxu0 0.0
    %1895 = vmatprep.subr.mxu0 0.0
    %1896 = vmatpush1.xpose.msra.mxu0 0.0
    %1897 = vmatprep.subr.mxu0 0.0
    %1898 = vmatpush1.xpose.msra.mxu0 0.0
    %1899 = vmatprep.subr.mxu0 0.0
    %1900 = vmatpush1.xpose.msra.mxu0 0.0
    %1901 = vmatprep.subr.mxu0 0.0
    %1902 = vmatpush1.xpose.msra.mxu0 0.0
    %1903 = vmatprep.subr.mxu0 0.0
    %1904 = vmatpush1.xpose.msra.mxu0 0.0
    %1905 = vmatprep.subr.mxu0 0.0
    %1906 = vmatpush1.xpose.msra.mxu0 0.0
    %1907 = vmatprep.subr.mxu0 0.0
    %1908 = vmatpush1.xpose.msra.mxu0 0.0
    %1909 = vmatprep.subr.mxu0 0.0
    %1910 = vmatpush1.xpose.msra.mxu0 0.0
    %1911 = vmatprep.subr.mxu0 0.0
    %1912 = vmatpush1.xpose.msra.mxu0 0.0
    %1913 = vmatprep.subr.mxu0 0.0
    %1914 = vmatpush1.xpose.msra.mxu0 0.0
    %1915 = vmatprep.subr.mxu0 0.0
    %1916 = vmatpush1.xpose.msra.mxu0 0.0
    %1917 = vmatprep.subr.mxu0 0.0
    %1918 = vmatpush1.xpose.msra.mxu0 0.0
    %1919 = vmatprep.subr.mxu0 0.0
    %1920 = vmatpush1.xpose.msra.mxu0 0.0
    %1921 = vmatprep.subr.mxu0 0.0
    %1922 = vmatpush1.xpose.msra.mxu0 0.0
    %1923 = vmatprep.mubr.f32.mxu0 0.0
    %1924 = vmatmul.mubr.f32.gmra.mrb[0].mxu0 %v1855
    %v1925 = vpop.f32.mrb[0].mxu0
    %v1926 = vadd.f32 %v168, %v1925
    %v1927 = vpop.f32.mrb[0].mxu0
    %1928 = vdwg.mxu0
    %v1929 = vsel %vm177, %v1926, -inf
    %1930 = vmax.xlane.f32.xlu0 %v1929
    %v1931 = vpop.xlane.xlu0 %1930
    %v1932 = vsub.f32 %v1926, %v1931
    %v1933 = vmul.f32 %v1932, 1.442695
    %v1934 = vpow.pop %v1933
    %v1935 = vsel %vm177, %v1934, 0.0
    %1936 = vadd.xlane.f32.xlu0 %v1935
    %v1937 = vpop.xlane.xlu0 %1936
    %v1938 = vrcp.pop %v1937
    %v1939 = vmul.f32 %v1934, %v1938
    %1940 = vrot.lane.b32.xlu0 %v160, 40
    %v1941 = vpop.permute.xlu0 %1940
    %v1944 = vsel %vm177, %v1939, 0
    %1946 = vmatprep.subr.mxu0 0.0
    %1947 = vmatpush1.msra.mxu0 %v1941
    %1948 = vmatprep.subr.mxu0 0.0
    %1949 = vmatpush1.msra.mxu0 0.0
    %1950 = vmatprep.subr.mxu0 0.0
    %1951 = vmatpush1.msra.mxu0 0.0
    %1952 = vmatprep.subr.mxu0 0.0
    %1953 = vmatpush1.msra.mxu0 0.0
    %1954 = vmatprep.subr.mxu0 0.0
    %1955 = vmatpush1.msra.mxu0 0.0
    %1956 = vmatprep.subr.mxu0 0.0
    %1957 = vmatpush1.msra.mxu0 0.0
    %1958 = vmatprep.subr.mxu0 0.0
    %1959 = vmatpush1.msra.mxu0 0.0
    %1960 = vmatprep.subr.mxu0 0.0
    %1961 = vmatpush1.msra.mxu0 0.0
    %1962 = vmatprep.subr.mxu0 0.0
    %1963 = vmatpush1.msra.mxu0 0.0
    %1964 = vmatprep.subr.mxu0 0.0
    %1965 = vmatpush1.msra.mxu0 0.0
    %1966 = vmatprep.subr.mxu0 0.0
    %1967 = vmatpush1.msra.mxu0 0.0
    %1968 = vmatprep.subr.mxu0 0.0
    %1969 = vmatpush1.msra.mxu0 0.0
    %1970 = vmatprep.subr.mxu0 0.0
    %1971 = vmatpush1.msra.mxu0 0.0
    %1972 = vmatprep.subr.mxu0 0.0
    %1973 = vmatpush1.msra.mxu0 0.0
    %1974 = vmatprep.subr.mxu0 0.0
    %1975 = vmatpush1.msra.mxu0 0.0
    %1976 = vmatprep.subr.mxu0 0.0
    %1977 = vmatpush1.msra.mxu0 0.0
    %1978 = vmatprep.subr.mxu0 0.0
    %1979 = vmatpush1.msra.mxu0 0.0
    %1980 = vmatprep.subr.mxu0 0.0
    %1981 = vmatpush1.msra.mxu0 0.0
    %1982 = vmatprep.subr.mxu0 0.0
    %1983 = vmatpush1.msra.mxu0 0.0
    %1984 = vmatprep.subr.mxu0 0.0
    %1985 = vmatpush1.msra.mxu0 0.0
    %1986 = vmatprep.subr.mxu0 0.0
    %1987 = vmatpush1.msra.mxu0 0.0
    %1988 = vmatprep.subr.mxu0 0.0
    %1989 = vmatpush1.msra.mxu0 0.0
    %1990 = vmatprep.subr.mxu0 0.0
    %1991 = vmatpush1.msra.mxu0 0.0
    %1992 = vmatprep.subr.mxu0 0.0
    %1993 = vmatpush1.msra.mxu0 0.0
    %1994 = vmatprep.subr.mxu0 0.0
    %1995 = vmatpush1.msra.mxu0 0.0
    %1996 = vmatprep.subr.mxu0 0.0
    %1997 = vmatpush1.msra.mxu0 0.0
    %1998 = vmatprep.subr.mxu0 0.0
    %1999 = vmatpush1.msra.mxu0 0.0
    %2000 = vmatprep.subr.mxu0 0.0
    %2001 = vmatpush1.msra.mxu0 0.0
    %2002 = vmatprep.subr.mxu0 0.0
    %2003 = vmatpush1.msra.mxu0 0.0
    %2004 = vmatprep.subr.mxu0 0.0
    %2005 = vmatpush1.msra.mxu0 0.0
    %2006 = vmatprep.subr.mxu0 0.0
    %2007 = vmatpush1.msra.mxu0 0.0
    %2008 = vmatprep.subr.mxu0 0.0
    %2009 = vmatpush1.msra.mxu0 0.0
    %2010 = vmatprep.mubr.f32.mxu0 0.0
    %2011 = vmatmul.mubr.f32.gmra.mrb[0].mxu0 %v1944
    %v2012 = vpop.f32.mrb[0].mxu0
    %v2013 = vadd.f32 0.0, %v2012
    %v2014 = vpop.f32.mrb[0].mxu0
    %2015 = vdwg.mxu0
    %v2017 = vsel %vm177, %v2013, 0
    %2019 = vmatprep.subr.mxu0 0.0
    %2020 = vmatpush1.msra.mxu0 %v172
    %2021 = vmatprep.subr.mxu0 0.0
    %2022 = vmatpush1.msra.mxu0 0.0
    %2023 = vmatprep.subr.mxu0 0.0
    %2024 = vmatpush1.msra.mxu0 0.0
    %2025 = vmatprep.subr.mxu0 0.0
    %2026 = vmatpush1.msra.mxu0 0.0
    %2027 = vmatprep.subr.mxu0 0.0
    %2028 = vmatpush1.msra.mxu0 0.0
    %2029 = vmatprep.subr.mxu0 0.0
    %2030 = vmatpush1.msra.mxu0 0.0
    %2031 = vmatprep.subr.mxu0 0.0
    %2032 = vmatpush1.msra.mxu0 0.0
    %2033 = vmatprep.subr.mxu0 0.0
    %2034 = vmatpush1.msra.mxu0 0.0
    %2035 = vmatprep.subr.mxu0 0.0
    %2036 = vmatpush1.msra.mxu0 0.0
    %2037 = vmatprep.subr.mxu0 0.0
    %2038 = vmatpush1.msra.mxu0 0.0
    %2039 = vmatprep.subr.mxu0 0.0
    %2040 = vmatpush1.msra.mxu0 0.0
    %2041 = vmatprep.subr.mxu0 0.0
    %2042 = vmatpush1.msra.mxu0 0.0
    %2043 = vmatprep.subr.mxu0 0.0
    %2044 = vmatpush1.msra.mxu0 0.0
    %2045 = vmatprep.subr.mxu0 0.0
    %2046 = vmatpush1.msra.mxu0 0.0
    %2047 = vmatprep.subr.mxu0 0.0
    %2048 = vmatpush1.msra.mxu0 0.0
    %2049 = vmatprep.subr.mxu0 0.0
    %2050 = vmatpush1.msra.mxu0 0.0
    %2051 = vmatprep.subr.mxu0 0.0
    %2052 = vmatpush1.msra.mxu0 0.0
    %2053 = vmatprep.subr.mxu0 0.0
    %2054 = vmatpush1.msra.mxu0 0.0
    %2055 = vmatprep.subr.mxu0 0.0
    %2056 = vmatpush1.msra.mxu0 0.0
    %2057 = vmatprep.subr.mxu0 0.0
    %2058 = vmatpush1.msra.mxu0 0.0
    %2059 = vmatprep.subr.mxu0 0.0
    %2060 = vmatpush1.msra.mxu0 0.0
    %2061 = vmatprep.subr.mxu0 0.0
    %2062 = vmatpush1.msra.mxu0 0.0
    %2063 = vmatprep.subr.mxu0 0.0
    %2064 = vmatpush1.msra.mxu0 0.0
    %2065 = vmatprep.subr.mxu0 0.0
    %2066 = vmatpush1.msra.mxu0 0.0
    %2067 = vmatprep.subr.mxu0 0.0
    %2068 = vmatpush1.msra.mxu0 0.0
    %2069 = vmatprep.subr.mxu0 0.0
    %2070 = vmatpush1.msra.mxu0 0.0
    %2071 = vmatprep.subr.mxu0 0.0
    %2072 = vmatpush1.msra.mxu0 0.0
    %2073 = vmatprep.subr.mxu0 0.0
    %2074 = vmatpush1.msra.mxu0 0.0
    %2075 = vmatprep.subr.mxu0 0.0
    %2076 = vmatpush1.msra.mxu0 0.0
    %2077 = vmatprep.subr.mxu0 0.0
    %2078 = vmatpush1.msra.mxu0 0.0
    %2079 = vmatprep.subr.mxu0 0.0
    %2080 = vmatpush1.msra.mxu0 0.0
    %2081 = vmatprep.subr.mxu0 0.0
    %2082 = vmatpush1.msra.mxu0 0.0
    %2083 = vmatprep.mubr.f32.mxu0 0.0
    %2084 = vmatmul.mubr.f32.gmra.mrb[0].mxu0 %v2017
    %v2085 = vpop.f32.mrb[0].mxu0
    %v2086 = vadd.f32 0.0, %v2085
    %v2087 = vpop.f32.mrb[0].mxu0
    %2088 = vdwg.mxu0
    %v2089 = vadd.f32 %v1850, %v2086
    %v2090 = vadd.f32 %v2089, %v1132
    %v2091 = vadd.f32 %v2090, %v25
    %v2092 = vsel %vm34, %v1134, 0.0
    %2093 = vadd.xlane.f32.xlu0 %v2092
    %v2094 = vpop.xlane.xlu0 %2093
    %v2095 = vsel %vm34, %v2091, 0.0
    %2096 = vadd.xlane.f32.xlu0 %v2095
    %v2097 = vpop.xlane.xlu0 %2096
    %v2098 = vmul.f32 %v2094, %v41
    %v2099 = vmul.f32 %v2097, %v41
    %v2100 = vsub.f32 %v1134, %v2098
    %v2101 = vsub.f32 %v2091, %v2099
    %v2102 = vmul.f32 %v2100, %v2100
    %v2103 = vmul.f32 %v2101, %v2101
    %v2104 = vsel %vm34, %v2102, 0.0
    %2105 = vadd.xlane.f32.xlu0 %v2104
    %v2106 = vpop.xlane.xlu0 %2105
    %v2107 = vsel %vm34, %v2103, 0.0
    %2108 = vadd.xlane.f32.xlu0 %v2107
    %v2109 = vpop.xlane.xlu0 %2108
    %v2110 = vmul.f32 %v2106, %v41
    %v2111 = vmul.f32 %v2109, %v41
    %v2112 = vadd.f32 %v2110, 1e-05
    %v2113 = vadd.f32 %v2111, 1e-05
    %v2114 = vrsqrt.pop %v2112
    %v2115 = vrsqrt.pop %v2113
    %v2116 = vmul.f32 %v2100, %v2114
    %v2117 = vmul.f32 %v2101, %v2115
    %v2118 = vlaneseq
    %v2119 = vshrl.u32 %v2118, 7
    %v2120 = vsub.s32 0, %v2119
    %v2121 = vrot.slane %v29, %v2120
    %v2122 = vmul.f32 %v2116, %v2121
    %v2123 = vmul.f32 %v2117, %v2121
    %v2124 = vlaneseq
    %v2125 = vshrl.u32 %v2124, 7
    %v2126 = vsub.s32 0, %v2125
    %v2127 = vrot.slane %v30, %v2126
    %v2128 = vadd.f32 %v2122, %v2127
    %v2129 = vadd.f32 %v2123, %v2127
    %v2130 = vld [vmem:[%s3] sm:$0xff]
    %v2131 = vld [vmem:[%s3 + $0x8] sm:$0xff]
    %v2132 = vld [vmem:[%s3 + $0x10] sm:$0xff]
    %v2133 = vld [vmem:[%s3 + $0x18] sm:$0xff]
    %v2134 = vlaneseq
    %v2135 = vshrl.u32 %v2134, 7
    %v2136 = vsub.s32 0, %v2135
    %v2137 = vrot.slane %v33, %v2136
    %v2139 = vsel %vm34, %v2128, 0
    %v2142 = vsel %vm34, %v2129, 0
    %2144 = vmatprep.subr.mxu0 0.0
    %2145 = vmatpush1.msra.mxu0 %v2130
    %2146 = vmatprep.subr.mxu0 0.0
    %2147 = vmatpush1.msra.mxu0 %v2131
    %2148 = vmatprep.subr.mxu0 0.0
    %2149 = vmatpush1.msra.mxu0 %v2132
    %2150 = vmatprep.subr.mxu0 0.0
    %2151 = vmatpush1.msra.mxu0 %v2133
    %2152 = vmatprep.subr.mxu0 0.0
    %2153 = vmatpush1.msra.mxu0 0.0
    %2154 = vmatprep.subr.mxu0 0.0
    %2155 = vmatpush1.msra.mxu0 0.0
    %2156 = vmatprep.subr.mxu0 0.0
    %2157 = vmatpush1.msra.mxu0 0.0
    %2158 = vmatprep.subr.mxu0 0.0
    %2159 = vmatpush1.msra.mxu0 0.0
    %2160 = vmatprep.subr.mxu0 0.0
    %2161 = vmatpush1.msra.mxu0 0.0
    %2162 = vmatprep.subr.mxu0 0.0
    %2163 = vmatpush1.msra.mxu0 0.0
    %2164 = vmatprep.subr.mxu0 0.0
    %2165 = vmatpush1.msra.mxu0 0.0
    %2166 = vmatprep.subr.mxu0 0.0
    %2167 = vmatpush1.msra.mxu0 0.0
    %2168 = vmatprep.subr.mxu0 0.0
    %2169 = vmatpush1.msra.mxu0 0.0
    %2170 = vmatprep.subr.mxu0 0.0
    %2171 = vmatpush1.msra.mxu0 0.0
    %2172 = vmatprep.subr.mxu0 0.0
    %2173 = vmatpush1.msra.mxu0 0.0
    %2174 = vmatprep.subr.mxu0 0.0
    %2175 = vmatpush1.msra.mxu0 0.0
    %2176 = vmatprep.subr.mxu0 0.0
    %2177 = vmatpush1.msra.mxu0 0.0
    %2178 = vmatprep.subr.mxu0 0.0
    %2179 = vmatpush1.msra.mxu0 0.0
    %2180 = vmatprep.subr.mxu0 0.0
    %2181 = vmatpush1.msra.mxu0 0.0
    %2182 = vmatprep.subr.mxu0 0.0
    %2183 = vmatpush1.msra.mxu0 0.0
    %2184 = vmatprep.subr.mxu0 0.0
    %2185 = vmatpush1.msra.mxu0 0.0
    %2186 = vmatprep.subr.mxu0 0.0
    %2187 = vmatpush1.msra.mxu0 0.0
    %2188 = vmatprep.subr.mxu0 0.0
    %2189 = vmatpush1.msra.mxu0 0.0
    %2190 = vmatprep.subr.mxu0 0.0
    %2191 = vmatpush1.msra.mxu0 0.0
    %2192 = vmatprep.subr.mxu0 0.0
    %2193 = vmatpush1.msra.mxu0 0.0
    %2194 = vmatprep.subr.mxu0 0.0
    %2195 = vmatpush1.msra.mxu0 0.0
    %2196 = vmatprep.subr.mxu0 0.0
    %2197 = vmatpush1.msra.mxu0 0.0
    %2198 = vmatprep.subr.mxu0 0.0
    %2199 = vmatpush1.msra.mxu0 0.0
    %2200 = vmatprep.subr.mxu0 0.0
    %2201 = vmatpush1.msra.mxu0 0.0
    %2202 = vmatprep.subr.mxu0 0.0
    %2203 = vmatpush1.msra.mxu0 0.0
    %2204 = vmatprep.subr.mxu0 0.0
    %2205 = vmatpush1.msra.mxu0 0.0
    %2206 = vmatprep.subr.mxu0 0.0
    %2207 = vmatpush1.msra.mxu0 0.0
    %2208 = vmatprep.mubr.f32.mxu0 0.0
    %2209 = vmatmul.mubr.f32.gmra.mrb[0].mxu0 %v2139
    %v2210 = vpop.f32.mrb[0].mxu0
    %v2211 = vadd.f32 %v2137, %v2210
    %v2212 = vpop.f32.mrb[0].mxu0
    %2213 = vmatprep.mubr.f32.mxu0 0.0
    %2214 = vmatmul.mubr.f32.gmra.mrb[0].mxu0 %v2142
    %v2215 = vpop.f32.mrb[0].mxu0
    %v2216 = vadd.f32 %v2137, %v2215
    %v2217 = vpop.f32.mrb[0].mxu0
    %2218 = vdwg.mxu0
    %v2219 = vmul.f32 %v2211, 1.702
    %v2220 = vmul.f32 %v2216, 1.702
    %v2221 = vxor.u32 %v2219, 2147483648
    %v2222 = vxor.u32 %v2220, 2147483648
    %v2223 = vmul.f32 %v2221, 1.442695
    %v2224 = vpow.pop %v2223
    %v2225 = vmul.f32 %v2222, 1.442695
    %v2226 = vpow.pop %v2225
    %v2227 = vadd.f32 %v2224, 1.0
    %v2228 = vadd.f32 %v2226, 1.0
    %v2229 = vrcp.pop %v2227
    %v2230 = vmul.f32 1.0, %v2229
    %v2231 = vrcp.pop %v2228
    %v2232 = vmul.f32 1.0, %v2231
    %v2233 = vmul.f32 %v2211, %v2230
    %v2234 = vmul.f32 %v2216, %v2232
    %v2235 = vld [vmem:[%s4] sm:$0xff]
    %v2236 = vld [vmem:[%s4 + $0x8] sm:$0xff]
    %v2237 = vld [vmem:[%s4 + $0x10] sm:$0xff]
    %v2238 = vld [vmem:[%s4 + $0x18] sm:$0xff]
    %v2239 = vld [vmem:[%s4 + $0x20] sm:$0xff]
    %v2240 = vld [vmem:[%s4 + $0x28] sm:$0xff]
    %v2241 = vld [vmem:[%s4 + $0x30] sm:$0xff]
    %v2242 = vld [vmem:[%s4 + $0x38] sm:$0xff]
    %v2243 = vld [vmem:[%s4 + $0x40] sm:$0xff]
    %v2244 = vld [vmem:[%s4 + $0x48] sm:$0xff]
    %v2245 = vld [vmem:[%s4 + $0x50] sm:$0xff]
    %v2246 = vld [vmem:[%s4 + $0x58] sm:$0xff]
    %v2247 = vld [vmem:[%s4 + $0x60] sm:$0xff]
    %v2248 = vld [vmem:[%s4 + $0x68] sm:$0xff]
    %v2249 = vld [vmem:[%s4 + $0x70] sm:$0xff]
    %v2250 = vld [vmem:[%s4 + $0x78] sm:$0xff]
    %v2251 = vlaneseq
    %v2252 = vshrl.u32 %v2251, 7
    %v2253 = vsub.s32 0, %v2252
    %v2254 = vrot.slane %v31, %v2253
    %2255 = vmatprep.subr.mxu0 0.0
    %2256 = vmatpush1.msra.mxu0 %v2235
    %2257 = vmatprep.subr.mxu0 0.0
    %2258 = vmatpush1.msra.mxu0 %v2236
    %2259 = vmatprep.subr.mxu0 0.0
    %2260 = vmatpush1.msra.mxu0 %v2237
    %2261 = vmatprep.subr.mxu0 0.0
    %2262 = vmatpush1.msra.mxu0 %v2238
    %2263 = vmatprep.subr.mxu0 0.0
    %2264 = vmatpush1.msra.mxu0 %v2239
    %2265 = vmatprep.subr.mxu0 0.0
    %2266 = vmatpush1.msra.mxu0 %v2240
    %2267 = vmatprep.subr.mxu0 0.0
    %2268 = vmatpush1.msra.mxu0 %v2241
    %2269 = vmatprep.subr.mxu0 0.0
    %2270 = vmatpush1.msra.mxu0 %v2242
    %2271 = vmatprep.subr.mxu0 0.0
    %2272 = vmatpush1.msra.mxu0 %v2243
    %2273 = vmatprep.subr.mxu0 0.0
    %2274 = vmatpush1.msra.mxu0 %v2244
    %2275 = vmatprep.subr.mxu0 0.0
    %2276 = vmatpush1.msra.mxu0 %v2245
    %2277 = vmatprep.subr.mxu0 0.0
    %2278 = vmatpush1.msra.mxu0 %v2246
    %2279 = vmatprep.subr.mxu0 0.0
    %2280 = vmatpush1.msra.mxu0 %v2247
    %2281 = vmatprep.subr.mxu0 0.0
    %2282 = vmatpush1.msra.mxu0 %v2248
    %2283 = vmatprep.subr.mxu0 0.0
    %2284 = vmatpush1.msra.mxu0 %v2249
    %2285 = vmatprep.subr.mxu0 0.0
    %2286 = vmatpush1.msra.mxu0 %v2250
    %2287 = vmatprep.subr.mxu0 0.0
    %2288 = vmatpush1.msra.mxu0 0.0
    %2289 = vmatprep.subr.mxu0 0.0
    %2290 = vmatpush1.msra.mxu0 0.0
    %2291 = vmatprep.subr.mxu0 0.0
    %2292 = vmatpush1.msra.mxu0 0.0
    %2293 = vmatprep.subr.mxu0 0.0
    %2294 = vmatpush1.msra.mxu0 0.0
    %2295 = vmatprep.subr.mxu0 0.0
    %2296 = vmatpush1.msra.mxu0 0.0
    %2297 = vmatprep.subr.mxu0 0.0
    %2298 = vmatpush1.msra.mxu0 0.0
    %2299 = vmatprep.subr.mxu0 0.0
    %2300 = vmatpush1.msra.mxu0 0.0
    %2301 = vmatprep.subr.mxu0 0.0
    %2302 = vmatpush1.msra.mxu0 0.0
    %2303 = vmatprep.subr.mxu0 0.0
    %2304 = vmatpush1.msra.mxu0 0.0
    %2305 = vmatprep.subr.mxu0 0.0
    %2306 = vmatpush1.msra.mxu0 0.0
    %2307 = vmatprep.subr.mxu0 0.0
    %2308 = vmatpush1.msra.mxu0 0.0
    %2309 = vmatprep.subr.mxu0 0.0
    %2310 = vmatpush1.msra.mxu0 0.0
    %2311 = vmatprep.subr.mxu0 0.0
    %2312 = vmatpush1.msra.mxu0 0.0
    %2313 = vmatprep.subr.mxu0 0.0
    %2314 = vmatpush1.msra.mxu0 0.0
    %2315 = vmatprep.subr.mxu0 0.0
    %2316 = vmatpush1.msra.mxu0 0.0
    %2317 = vmatprep.subr.mxu0 0.0
    %2318 = vmatpush1.msra.mxu0 0.0
    %2319 = vmatprep.mubr.f32.mxu0 0.0
    %2320 = vmatmul.mubr.f32.gmra.mrb[0].mxu0 %v2233
    %v2321 = vpop.f32.mrb[0].mxu0
    %v2322 = vadd.f32 %v2254, %v2321
    %v2323 = vpop.f32.mrb[0].mxu0
    %2324 = vmatprep.mubr.f32.mxu0 0.0
    %2325 = vmatmul.mubr.f32.gmra.mrb[0].mxu0 %v2234
    %v2326 = vpop.f32.mrb[0].mxu0
    %v2327 = vadd.f32 %v2254, %v2326
    %v2328 = vpop.f32.mrb[0].mxu0
    %2329 = vdwg.mxu0
    %v2330 = vadd.f32 %v1134, %v2322
    %v2331 = vadd.f32 %v2091, %v2327
    %2332 = vst.msk [vmem:[#allocation2] sm:$0xff] %vm34, %v2330
    %2333 = vst.msk [vmem:[#allocation2 + $0x8] sm:$0xff] %vm34, %v2331
    // Predicated region
    $region26: #{tpu_custom_call.1} parent=1 // pred_check
      _
    $region27: #{tpu_custom_call.1} parent=1 // pred_check_branch
      %2335 = sbr.rel (0) target = $region29
    $region28: #{tpu_custom_call.1} parent=1 // pred_region
      %s2337 = ssub.s32 256, 256
      %2338 = vsyncadd [#allocation3], %s2337
      %s2339 = sshll.u32 [#allocation2], 4
      %s2340 = int_to_ptr.vmem [resolvable:$true] %s2339
      %2345 = dma.vmem_to_hbm [thread:$0]  %s2340, 256, %s6, [#allocation3], 128, 128, 8
    $region29: #{tpu_custom_call.1} parent=1 // pred_fallthru
      _
    // Predicated region
    $region30: #{tpu_custom_call.1} parent=1 // pred_check
      _
    $region31: #{tpu_custom_call.1} parent=1 // pred_check_branch
      %2347 = sbr.rel (0) target = $region33
    $region32: #{tpu_custom_call.1} parent=1 // pred_region
      %2348 = dma.done [#allocation3], 256
    $region33: #{tpu_custom_call.1} parent=1 // pred_fallthru
      _
    %2349 = vsyncpa [#allocation3], 1

</llo_original>
